<compile_context>
chip_gen: v5e
topology: v5e:2x2
jax: 0.10.0
libtpu: 0.0.40
codegen_flags: <defaults>
</compile_context>

<pallas_src>
import functools

import numpy as np
import jax
import jax.numpy as jnp
from jax import lax
from jax.experimental import pallas as pl
from jax.experimental.pallas import tpu as pltpu


def _align(n: int, m: int) -> int:
    return ((n + m - 1) // m) * m


# -----------------------------------------------------------------------------
# Core Pallas kernel: one fused  out = act(W @ X + b)  MXU matmul per grid step.
#   W : (Mp, Kp)      bf16, resident
#   b : (Mp, 1)       f32,  resident
#   X : (1, Kp, l)    bf16, streamed per (batch, lane-tile)
#   O : (1, Mp, l)    f32
# -----------------------------------------------------------------------------
def _mm_kernel_leaky(w_ref, b_ref, x_ref, o_ref):
    acc = jnp.dot(w_ref[...], x_ref[0], preferred_element_type=jnp.float32)
    acc = acc + b_ref[...]
    o_ref[0] = jnp.where(acc >= 0.0, acc, 0.2 * acc)   # fused LeakyReLU (f32)


def _mm_kernel_plain(w_ref, b_ref, x_ref, o_ref):
    acc = jnp.dot(w_ref[...], x_ref[0], preferred_element_type=jnp.float32)
    o_ref[0] = acc + b_ref[...]


@functools.lru_cache(maxsize=None)
def _build_mm(B, Mp, Kp, n_tiles, l_tile, leaky):
    kernel = _mm_kernel_leaky if leaky else _mm_kernel_plain
    Lp = n_tiles * l_tile
    return jax.jit(pl.pallas_call(
        kernel,
        out_shape=jax.ShapeDtypeStruct((B, Mp, Lp), jnp.float32),
        grid_spec=pltpu.PrefetchScalarGridSpec(
            num_scalar_prefetch=0,
            grid=(B, n_tiles),
            in_specs=[
                pl.BlockSpec((Mp, Kp), lambda b, t: (0, 0)),          # weights (resident)
                pl.BlockSpec((Mp, 1), lambda b, t: (0, 0)),           # bias (resident)
                pl.BlockSpec((1, Kp, l_tile), lambda b, t: (b, 0, t)),  # input slab
            ],
            out_specs=pl.BlockSpec((1, Mp, l_tile), lambda b, t: (b, 0, t)),
        ),
        compiler_params=pltpu.CompilerParams(
            dimension_semantics=("parallel", "parallel"),
            vmem_limit_bytes=48 * 1024 * 1024,
        ),
    ))


_MAX_LANE_TILE = 2048


def _matmul_act(w_bf16, b_f32, x_bf16, leaky):
    """w:(Mp,Kp) bf16, b:(Mp,1) f32, x:(B,Kp,L) bf16 -> (B,Mp,Lp>=L) f32."""
    B, Kp, L = x_bf16.shape
    Mp = w_bf16.shape[0]
    n_tiles = max(1, pl.cdiv(L, _MAX_LANE_TILE))
    l_tile = _align(pl.cdiv(L, n_tiles), 128)
    Lp = n_tiles * l_tile
    if Lp != L:
        x_bf16 = jnp.pad(x_bf16, ((0, 0), (0, 0), (0, Lp - L)))
    return _build_mm(B, Mp, Kp, n_tiles, l_tile, leaky)(w_bf16, b_f32, x_bf16)


def _pack_w_b(w2d, b, Mp, Kp):
    Cout, K = w2d.shape
    wp = jnp.zeros((Mp, Kp), jnp.bfloat16).at[:Cout, :K].set(w2d.astype(jnp.bfloat16))
    bp = jnp.zeros((Mp, 1), jnp.float32).at[:Cout, 0].set(b.astype(jnp.float32))
    return wp, bp


# -----------------------------------------------------------------------------
# Conv layers via wrapper-side im2col (layout plumbing) + the Pallas matmul kernel
# -----------------------------------------------------------------------------
def conv1d_pallas(x, w, b, dilation, leaky):
    """x:(B,Cin,T) f32, w:(Cout,Cin,kw); 'same' dilated conv1d (+ fused LeakyReLU)."""
    B, Cin, T = x.shape
    Cout, _, kw = w.shape
    d = dilation
    p = (kw - 1) // 2 * d
    K, Kp, Mp = kw * Cin, _align(kw * Cin, 16), _align(Cout, 16)
    xp = jnp.pad(x, ((0, 0), (0, 0), (p, p))).astype(jnp.bfloat16)
    # im2col: fold the kw taps into the MXU contraction (channel) axis
    cols = jnp.concatenate([xp[:, :, j * d:j * d + T] for j in range(kw)], axis=1)
    if Kp != K:
        cols = jnp.pad(cols, ((0, 0), (0, Kp - K), (0, 0)))
    wp, bp = _pack_w_b(jnp.transpose(w, (0, 2, 1)).reshape(Cout, K), b, Mp, Kp)
    out = _matmul_act(wp, bp, cols, leaky)
    return out[:, :Cout, :T]


def conv2d_pallas(x, w, b, dilation, pad_f, pad_t, leaky):
    """x:(B,Cin,F,T) f32, w:(Cout,Cin,kh,kw); zero-padded dilated conv2d."""
    B, Cin, F, T = x.shape
    Cout, _, kh, kw = w.shape
    d = dilation
    F_pad, T_pad = F + 2 * pad_f, T + 2 * pad_t
    F_out, T_out = F_pad - d * (kh - 1), T_pad - d * (kw - 1)
    valid = (T_out - 1) * F_pad + F_out
    K, Kp, Mp = kh * kw * Cin, _align(kh * kw * Cin, 16), _align(Cout, 16)
    xp = jnp.pad(x, ((0, 0), (0, 0), (pad_f, pad_f), (pad_t, pad_t)))
    # flatten with the long F axis innermost (lane axis): spatial index = t*F_pad + f
    xf = jnp.transpose(xp, (0, 1, 3, 2)).reshape(B, Cin, T_pad * F_pad)
    xf = xf.astype(jnp.bfloat16)
    # im2col over all kh*kw taps -> single MXU contraction of size kh*kw*Cin
    cols = jnp.concatenate(
        [xf[:, :, (i * d + j * d * F_pad):(i * d + j * d * F_pad) + valid]
         for i in range(kh) for j in range(kw)], axis=1)
    if Kp != K:
        cols = jnp.pad(cols, ((0, 0), (0, Kp - K), (0, 0)))
    wp, bp = _pack_w_b(jnp.transpose(w, (0, 2, 3, 1)).reshape(Cout, K), b, Mp, Kp)
    out = _matmul_act(wp, bp, cols, leaky)[:, :Cout, :valid]
    out = jnp.pad(out, ((0, 0), (0, 0), (0, T_out * F_pad - valid)))
    out = out.reshape(B, Cout, T_out, F_pad)[:, :, :, :F_out]
    return jnp.transpose(out, (0, 1, 3, 2))                      # (B,Cout,F_out,T_out)


# -----------------------------------------------------------------------------
# STFT (center=True, reflect pad, periodic Hann) as a Pallas windowed-DFT matmul
# -----------------------------------------------------------------------------
_N_FFT, _HOP = 512, 256


def _stft_basis_np(n_fft=_N_FFT):
    n = np.arange(n_fft)
    f = np.arange(n_fft // 2 + 1)
    win = 0.5 * (1.0 - np.cos(2.0 * np.pi * n / n_fft))          # periodic Hann
    ang = 2.0 * np.pi * f[:, None] * n[None, :] / n_fft
    return np.concatenate([np.cos(ang) * win, -np.sin(ang) * win], 0).astype(np.float32)


def _frames(sig, n_fft=_N_FFT, hop=_HOP):
    B, T = sig.shape
    n_frames = 1 + T // hop
    padded = jnp.pad(sig, ((0, 0), (n_fft // 2, n_fft // 2)), mode="reflect")
    idx = np.arange(n_frames)[:, None] * hop + np.arange(n_fft)[None, :]
    return padded[:, idx], n_frames                              # (B, n_frames, n_fft)


def stft_pallas(sig):
    basis = _stft_basis_np()                                     # (514, 512)
    rows = basis.shape[0]
    Mp = _align(rows, 16)
    frames, n_frames = _frames(sig)
    x = jnp.transpose(frames, (0, 2, 1)).astype(jnp.bfloat16)    # (B, n_fft, n_frames)
    wp = jnp.zeros((Mp, _N_FFT), jnp.bfloat16).at[:rows].set(
        jnp.asarray(basis, jnp.bfloat16))
    bp = jnp.zeros((Mp, 1), jnp.float32)
    out = _matmul_act(wp, bp, x, False)                          # (B, Mp, >=n_frames)
    nfreq = _N_FFT // 2 + 1
    return jnp.stack([out[:, :nfreq, :n_frames],
                      out[:, nfreq:2 * nfreq, :n_frames]], axis=1)  # (B,2,257,n_frames)


# -----------------------------------------------------------------------------
# Log-harmonic lowering (frequency shifts); static gathers in the wrapper
# -----------------------------------------------------------------------------
def _make_log_shift(anchor=7, kf=7, out_scale=1000.0, in_scale=0.001, radix=None):
    np_shift = (np.arange(kf) + 1) / anchor
    log_shift = out_scale * np.log(in_scale * np_shift)
    if radix is not None:
        log_shift = log_shift / np.log(radix)
    log_shift = log_shift - log_shift[anchor - 1]
    return [float(s) for s in -log_shift]


LOG_SHIFTS = _make_log_shift()


def _shift_freq(x, shift):
    """Shift along the frequency axis (dim 2) by `shift` bins, zero filled.
    TODO(synk): the fractional branch assumes IS.interp_shift == linear interpolation
    of x[f - shift] with zero fill (matches the integer branch of `Shift`)."""
    Fq = x.shape[2]
    if float(shift) == int(shift):
        s = int(shift)
        if s == 0:
            return x
        if abs(s) >= Fq:
            return jnp.zeros_like(x)
        if s > 0:
            return jnp.pad(x[:, :, :Fq - s, :], ((0, 0), (0, 0), (s, 0), (0, 0)))
        return jnp.pad(x[:, :, -s:, :], ((0, 0), (0, 0), (0, -s), (0, 0)))
    pos = np.arange(Fq, dtype=np.float64) - shift
    i0 = np.floor(pos).astype(np.int64)
    frac = (pos - i0).astype(np.float32)
    i1 = i0 + 1
    w0 = np.where((i0 >= 0) & (i0 < Fq), 1.0 - frac, 0.0).astype(np.float32)
    w1 = np.where((i1 >= 0) & (i1 < Fq), frac, 0.0).astype(np.float32)
    if not (w0.any() or w1.any()):
        return jnp.zeros_like(x)          # shift entirely outside the spectrum
    i0c, i1c = np.clip(i0, 0, Fq - 1), np.clip(i1, 0, Fq - 1)
    return (w0[None, None, :, None] * x[:, :, i0c, :]
            + w1[None, None, :, None] * x[:, :, i1c, :])


def _harmonic_lowering(x, shifts):
    # channel layout = [shift_1 ch0, shift_1 ch1, shift_2 ch0, ...] ('stack', groups=1)
    return jnp.concatenate([_shift_freq(x, s) for s in shifts], axis=1)


# -----------------------------------------------------------------------------
# Model forward (Pallas path)
# -----------------------------------------------------------------------------
def tdd_forward(layers, x):
    feats = []
    h = x
    for (w, b, d) in layers[:-1]:
        h = conv1d_pallas(h, w, b, d, leaky=True)
        feats += [h, h]                  # inplace LeakyReLU aliasing in the reference
    w, b, d = layers[-1]
    h = conv1d_pallas(h, w, b, d, leaky=False)
    feats.append(h)
    return [h.reshape(h.shape[0], -1)], [feats]


def hsd_forward(p, x):
    feats = []
    spec = stft_pallas(x[:, 0, :])                               # (B, 2, 257, Tn)
    lowered = _harmonic_lowering(spec, LOG_SHIFTS)               # (B, 14, 257, Tn)
    h = conv2d_pallas(lowered, p["h_w"], p["h_b"], dilation=1,
                      pad_f=0, pad_t=3, leaky=True)              # harmonic conv (1x7)
    feats += [h, h]
    for (w, b, d) in p["convs"][:-1]:
        h = conv2d_pallas(h, w, b, d, pad_f=d, pad_t=d, leaky=True)
        feats += [h, h]
    w, b, d = p["convs"][-1]                                     # last layer: d == 1
    h = conv2d_pallas(h, w, b, d, pad_f=d, pad_t=d, leaky=False)
    feats.append(h)
    return [h.reshape(h.shape[0], -1)], [feats]


def harmonic_wavegan_discriminator(params, x):
    s_t, f_t = tdd_forward(params["tdd"], x)
    s_h, f_h = hsd_forward(params["hsd"], x)
    return s_t + s_h, f_t + f_h


# -----------------------------------------------------------------------------
# Pure-JAX f32 reference (lax convs + rfft) for correctness checking
# -----------------------------------------------------------------------------
def _leaky(x):
    return jnp.where(x >= 0, x, 0.2 * x)


def _conv1d_ref(x, w, b, d):
    p = (w.shape[2] - 1) // 2 * d
    y = lax.conv_general_dilated(x, w, window_strides=(1,), padding=[(p, p)],
                                 rhs_dilation=(d,),
                                 dimension_numbers=("NCH", "OIH", "NCH"),
                                 precision=lax.Precision.HIGHEST)
    return y + b[None, :, None]


def _conv2d_ref(x, w, b, d, pf, pt):
    y = lax.conv_general_dilated(x, w, window_strides=(1, 1),
                                 padding=[(pf, pf), (pt, pt)], rhs_dilation=(d, d),
                                 dimension_numbers=("NCHW", "OIHW", "NCHW"),
                                 precision=lax.Precision.HIGHEST)
    return y + b[None, :, None, None]


def _stft_ref(sig):
    win = jnp.asarray(0.5 * (1.0 - np.cos(2.0 * np.pi * np.arange(_N_FFT) / _N_FFT)),
                      jnp.float32)
    frames, _ = _frames(sig)
    spec = jnp.fft.rfft(frames * win[None, None, :], axis=-1)
    real = jnp.transpose(jnp.real(spec), (0, 2, 1))
    imag = jnp.transpose(jnp.imag(spec), (0, 2, 1))
    return jnp.stack([real, imag], axis=1).astype(jnp.float32)


def _discriminator_ref(params, x):
    feats_t, h = [], x
    for (w, b, d) in params["tdd"][:-1]:
        h = _leaky(_conv1d_ref(h, w, b, d)); feats_t += [h, h]
    w, b, d = params["tdd"][-1]
    h = _conv1d_ref(h, w, b, d); feats_t.append(h)
    score_t = h.reshape(h.shape[0], -1)

    p = params["hsd"]
    feats_h = []
    spec = _stft_ref(x[:, 0, :])
    lowered = _harmonic_lowering(spec, LOG_SHIFTS)
    h = _leaky(_conv2d_ref(lowered, p["h_w"], p["h_b"], 1, 0, 3)); feats_h += [h, h]
    for (w, b, d) in p["convs"][:-1]:
        h = _leaky(_conv2d_ref(h, w, b, d, d, d)); feats_h += [h, h]
    w, b, d = p["convs"][-1]
    h = _conv2d_ref(h, w, b, d, d, d); feats_h.append(h)
    score_h = h.reshape(h.shape[0], -1)
    return [score_t, score_h], [feats_t, feats_h]


# -----------------------------------------------------------------------------
# Parameter construction (weight_norm folded into effective weights at inference)
# -----------------------------------------------------------------------------
def make_params(key):
    keys = iter(jax.random.split(key, 64))

    def w_init(shape, fan):
        return jax.random.normal(next(keys), shape, jnp.float32) / np.sqrt(fan)

    def b_init(n):
        return jax.random.normal(next(keys), (n,), jnp.float32)

    tdd, cin = [], 1
    for i in range(9):
        d = 1 if i == 0 else i
        tdd.append((w_init((64, cin, 3), cin * 3), b_init(64), d))
        cin = 64
    tdd.append((w_init((1, 64, 3), 64 * 3), b_init(1), 1))

    hsd = {
        "h_w": w_init((64, 14, 1, 7), 14 * 7),   # lowered_weight of SingleLogHarmonicConv2d
        "h_b": b_init(64),
        "convs": [(w_init((64, 64, 3, 3), 64 * 9), b_init(64), i) for i in range(1, 9)]
                 + [(w_init((1, 64, 3, 3), 64 * 9), b_init(1), 1)],
    }
    return {"tdd": tdd, "hsd": hsd}


# -----------------------------------------------------------------------------
if __name__ == "__main__":
    key = jax.random.PRNGKey(0)
    kx, kp = jax.random.split(key)
    B, T = 2, 2048
    x = jax.random.normal(kx, (B, 1, T), jnp.float32)
    params = make_params(kp)

    scores, feats = harmonic_wavegan_discriminator(params, x)
    jax.block_until_ready((scores, feats))

    # correctness vs a pure-JAX f32 reference; the Pallas path uses bf16 MXU operands
    # with f32 accumulation, so allow a few % drift over the 10-layer conv chains.
    scores_r, feats_r = _discriminator_ref(params, x)

    def _check(name, a, b, rel=7.5e-2):
        a, b = np.asarray(a), np.asarray(b)
        assert a.shape == b.shape, (name, a.shape, b.shape)
        assert np.isfinite(a).all(), name
        diff = float(np.max(np.abs(a - b)))
        tol = rel * (float(np.max(np.abs(b))) + 1.0)
        assert diff <= tol, (name, diff, tol)

    _check("stft", stft_pallas(x[:, 0, :]), _stft_ref(x[:, 0, :]), rel=3e-2)
    for i, (a, bb) in enumerate(zip(scores, scores_r)):
        _check(f"score{i}", a, bb)
    for gi, (fa, fb) in enumerate(zip(feats, feats_r)):
        assert len(fa) == len(fb) == 19
        for li, (a, bb) in enumerate(zip(fa, fb)):
            _check(f"feat{gi}_{li}", a, bb)

    n_frames = 1 + T // _HOP
    assert len(scores) == 2 and len(feats) == 2
    assert scores[0].shape == (B, T)
    assert scores[1].shape == (B, 257 * n_frames)

    print("KERNEL_OK")
</pallas_src>

<mosaic_0001>
module attributes {stable_mosaic.version = 11 : i64} {
  func.func @_mm_kernel_leaky(%arg0: i32, %arg1: i32, %arg2: memref<64x16xbf16, #tpu.memory_space<vmem>>, %arg3: memref<64x1xf32, #tpu.memory_space<vmem>>, %arg4: memref<1x16x2048xbf16, #tpu.memory_space<vmem>>, %arg5: memref<1x64x2048xf32, #tpu.memory_space<vmem>>) attributes {dimension_semantics = [#tpu.dimension_semantics<parallel>, #tpu.dimension_semantics<parallel>], iteration_bounds = array<i64: 2, 1>, scalar_prefetch = 0 : i64, scratch_operands = 0 : i64, tpu.core_type = #tpu.core_type<tc>, window_params = [{pipeline_mode = #tpu.pipeline_mode<synchronous>, transform_indices = @transform_0, window_bounds = array<i64: 64, 16>}, {pipeline_mode = #tpu.pipeline_mode<synchronous>, transform_indices = @transform_1, window_bounds = array<i64: 64, 1>}, {transform_indices = @transform_2, window_bounds = array<i64: 1, 16, 2048>}, {transform_indices = @transform_3, window_bounds = array<i64: 1, 64, 2048>}]} {
    %c0 = arith.constant 0 : index
    %c0_0 = arith.constant 0 : index
    %0 = vector.load %arg2[%c0, %c0_0] : memref<64x16xbf16, #tpu.memory_space<vmem>>, vector<64x16xbf16>
    %c0_1 = arith.constant 0 : index
    %c0_2 = arith.constant 0 : index
    %c0_3 = arith.constant 0 : index
    %1 = vector.load %arg4[%c0_1, %c0_2, %c0_3] : memref<1x16x2048xbf16, #tpu.memory_space<vmem>>, vector<1x16x2048xbf16>
    %2 = vector.shape_cast %1 : vector<1x16x2048xbf16> to vector<16x2048xbf16>
    %cst = arith.constant dense<0.000000e+00> : vector<64x2048xf32>
    %3 = tpu.matmul %0, %2, %cst {dimension_numbers = #tpu.dot_dimension_numbers<[1], [0], [0], [1], [0, 0, 1, 1], [], []>} : vector<64x16xbf16>, vector<16x2048xbf16>, vector<64x2048xf32> -> vector<64x2048xf32>
    %c0_4 = arith.constant 0 : index
    %c0_5 = arith.constant 0 : index
    %4 = vector.load %arg3[%c0_4, %c0_5] : memref<64x1xf32, #tpu.memory_space<vmem>>, vector<64x1xf32>
    %5 = vector.broadcast %4 : vector<64x1xf32> to vector<64x2048xf32>
    %6 = arith.addf %3, %5 : vector<64x2048xf32>
    %cst_6 = arith.constant 0.000000e+00 : f32
    %7 = vector.broadcast %cst_6 : f32 to vector<64x2048xf32>
    %8 = arith.cmpf oge, %6, %7 : vector<64x2048xf32>
    %cst_7 = arith.constant 2.000000e-01 : f32
    %9 = vector.broadcast %cst_7 : f32 to vector<64x2048xf32>
    %10 = arith.mulf %9, %6 : vector<64x2048xf32>
    %11 = arith.select %8, %6, %10 : vector<64x2048xi1>, vector<64x2048xf32>
    %c0_8 = arith.constant 0 : index
    %c0_9 = arith.constant 0 : index
    %c0_10 = arith.constant 0 : index
    %12 = vector.load %arg5[%c0_8, %c0_9, %c0_10] : memref<1x64x2048xf32, #tpu.memory_space<vmem>>, vector<1x64x2048xf32>
    %13 = vector.shape_cast %12 : vector<1x64x2048xf32> to vector<64x2048xf32>
    %14 = vector.shape_cast %11 : vector<64x2048xf32> to vector<1x64x2048xf32>
    tpu.vector_store %arg5[%c0_8, %c0_9, %c0_10], %14 {strides = array<i32>} : memref<1x64x2048xf32, #tpu.memory_space<vmem>>, vector<1x64x2048xf32>,
    return
  }
  func.func @transform_0(%arg0: i32, %arg1: i32) -> (i32, i32) {
    %c0_i32 = arith.constant 0 : i32
    %c0_i32_0 = arith.constant 0 : i32
    %c0_i32_1 = arith.constant 0 : i32
    return %c0_i32, %c0_i32_0 : i32, i32
  }
  func.func @transform_1(%arg0: i32, %arg1: i32) -> (i32, i32) {
    %c0_i32 = arith.constant 0 : i32
    %c0_i32_0 = arith.constant 0 : i32
    %c0_i32_1 = arith.constant 0 : i32
    return %c0_i32, %c0_i32_0 : i32, i32
  }
  func.func @transform_2(%arg0: i32, %arg1: i32) -> (i32, i32, i32) {
    %c0_i32 = arith.constant 0 : i32
    %c0_i32_0 = arith.constant 0 : i32
    return %arg0, %c0_i32, %arg1 : i32, i32, i32
  }
  func.func @transform_3(%arg0: i32, %arg1: i32) -> (i32, i32, i32) {
    %c0_i32 = arith.constant 0 : i32
    %c0_i32_0 = arith.constant 0 : i32
    return %arg0, %c0_i32, %arg1 : i32, i32, i32
  }
}

</mosaic_0001>

<llo_original>
// kernel: tpu_custom_call.1
$region0: #{tpu_custom_call.1}
  #allocation0 [shape = 'u32[]', space=smem, size = 0x4, offset = 0x4, fixed_abs, tag = 'smem constant byte address 0x4 - core index']
  #allocation1 [shape = 'u32[72,128]{1,0:T(1,128)}', space=vmem, size = 0x9000, scoped, tag = 'internal scratch']
  %s0 = inlined_call_operand.vmem [shape: bf16[64,16], index: 0, kind: input, shape index: {}]
  %s1 = inlined_call_operand.vmem [shape: f32[64,1], index: 1, kind: input, shape index: {}]
  %s2 = inlined_call_operand.hbm [shape: bf16[2,16,2048], index: 2, kind: input, shape index: {}]
  %s3 = inlined_call_operand.hbm [shape: f32[2,64,2048], index: 3, kind: output, shape index: {}]
  %s4 = sld [smem:[#allocation0]]
  $region49: #{tpu_custom_call.1} parent=0
    _
  %s6 = ssub.s32 1, %s4
  %s7 = scalar_select 0, %s6, %s4
  $region1: #{tpu_custom_call.1} parent=0
    #allocation2 [shape = 'u8[131072]{0}', space=vmem, size = 0x20000, scoped, tag = 'input window, operand 2']
    #allocation3 [shape = 's32[2]{0}', space=sflag, size = 0x8, scoped, tag = 'scoped memory for tpu_custom_call.1']
    #allocation4 [shape = 's32[2]{0}', space=sflag, size = 0x8, scoped, tag = 'scoped memory for tpu_custom_call.1']
    #allocation5 [shape = 'u8[1048576]{0}', space=vmem, size = 0x100000, scoped, tag = 'output window, operand 0']
    %8 = vsyncpa [#allocation3], 0
    %s9 = scalar_lea.sflag [#allocation3], 1
    %10 = vsyncpa %s9, 0
    %11 = vsyncpa [#allocation4], 0
    %s12 = scalar_lea.sflag [#allocation4], 1
    %13 = vsyncpa %s12, 0
    loop: start=0, step=1, limit=4
    $region2: #{tpu_custom_call.1} parent=1 // loop_pre_header
      _
    $region3: #{tpu_custom_call.1} parent=1 // loop_header
      %s15 = sphi 0, %s19
      %p16 = scmp.ge.s32.totalorder %s15, 4
      %s22 = sphi 0, %s34
      %s23 = sphi 0, %s30
      %s24 = sphi 0, %s22
      %s25 = sphi 0, %s23
      %s26 = sphi 0, %s24
      %s27 = sphi 0, %s25
      %s35 = sphi 0, %s35
      %s37 = sphi 0, %s35
      %s38 = sphi 0, %s37
      %s52 = sphi 0, %s38
      %s56 = sphi 0, %s56
      %s58 = sphi 0, %s56
      %s59 = sphi 0, %s58
      %s73 = sphi 0, %s59
      %s81 = sphi 0, %s83
      %s84 = sphi 0, %s81
      %s85 = sphi 0, %s84
      %s101 = sphi 0, %s85
      %s109 = sphi 0, %s111
      %s112 = sphi 0, %s109
      %s113 = sphi 0, %s112
      %s129 = sphi 0, %s113
    $region4: #{tpu_custom_call.1} parent=1 // loop_header_branch
      %18 = sbr.rel (%p16) target = $region8
    $region5: #{tpu_custom_call.1} parent=1 // loop_body
      %s20 = ssub.s32 %s15, 1
      %s21 = ssub.s32 %s15, 2
      %s28 = sadd.s32 1, %s23
      %p29 = scmp.ge.s32.totalorder %s28, 1
      %s30 = scalar_select %p29, 0, %s28
      %s31 = sadd.s32 1, %s22
      %s32 = scalar_select %p29, %s31, %s22
      %p33 = scmp.ge.s32.totalorder %s32, 2
      %s34 = scalar_select %p33, 0, %s32
      %s36 = sadd.s32 %s35, 1
      %p39 = scmp.eq.s32.totalorder %s15, 1
      %p40 = scmp.ne.s32.totalorder %s35, %s37
      %p41 = scmp.eq.s32.totalorder %s15, 0
      %p42 = por %p40, %p41
      %p43 = scmp.ne.s32.totalorder %s35, %s37
      %p44 = scmp.eq.s32.totalorder %s20, 1
      %p45 = por %p43, %p44
      %p46 = scmp.ne.s32.totalorder %s37, %s38
      %p47 = scmp.eq.s32.totalorder %s20, 0
      %p48 = por %p46, %p47
      %p49 = scmp.ne.s32.totalorder %s37, %s38
      %p50 = scmp.eq.s32.totalorder %s21, 1
      %p51 = por %p49, %p50
      %p53 = scmp.ne.s32.totalorder %s38, %s52
      %p54 = scmp.eq.s32.totalorder %s21, 0
      %p55 = por %p53, %p54
      %s57 = sadd.s32 %s56, 1
      %p60 = scmp.eq.s32.totalorder %s15, 1
      %p61 = scmp.ne.s32.totalorder %s56, %s58
      %p62 = scmp.eq.s32.totalorder %s15, 0
      %p63 = por %p61, %p62
      %p64 = scmp.ne.s32.totalorder %s56, %s58
      %p65 = scmp.eq.s32.totalorder %s20, 1
      %p66 = por %p64, %p65
      %p67 = scmp.ne.s32.totalorder %s58, %s59
      %p68 = scmp.eq.s32.totalorder %s20, 0
      %p69 = por %p67, %p68
      %p70 = scmp.ne.s32.totalorder %s58, %s59
      %p71 = scmp.eq.s32.totalorder %s21, 1
      %p72 = por %p70, %p71
      %p74 = scmp.ne.s32.totalorder %s59, %s73
      %p75 = scmp.eq.s32.totalorder %s21, 0
      %p76 = por %p74, %p75
      %s77 = ssub.s32 %s22, %s34
      %s78 = ssub.s32 %s23, %s30
      %s79 = sor.u32 %s77, %s78
      %p80 = scmp.eq.s32.totalorder %s79, 0
      %s82 = sadd.s32 %s81, 1
      %s83 = scalar_select %p80, %s81, %s82
      %p86 = pneg %p80
      %p87 = scmp.eq.s32.totalorder %s15, 1
      %p88 = por %p86, %p87
      %p89 = scmp.ne.s32.totalorder %s81, %s84
      %p90 = scmp.eq.s32.totalorder %s15, 0
      %p91 = por %p89, %p90
      %p92 = scmp.ne.s32.totalorder %s81, %s84
      %p93 = scmp.eq.s32.totalorder %s20, 1
      %p94 = por %p92, %p93
      %p95 = scmp.ne.s32.totalorder %s84, %s85
      %p96 = scmp.eq.s32.totalorder %s20, 0
      %p97 = por %p95, %p96
      %p98 = scmp.ne.s32.totalorder %s84, %s85
      %p99 = scmp.eq.s32.totalorder %s21, 1
      %p100 = por %p98, %p99
      %p102 = scmp.ne.s32.totalorder %s85, %s101
      %p103 = scmp.eq.s32.totalorder %s21, 0
      %p104 = por %p102, %p103
      %s105 = ssub.s32 %s22, %s34
      %s106 = ssub.s32 %s23, %s30
      %s107 = sor.u32 %s105, %s106
      %p108 = scmp.eq.s32.totalorder %s107, 0
      %s110 = sadd.s32 %s109, 1
      %s111 = scalar_select %p108, %s109, %s110
      %p114 = pneg %p108
      %p115 = scmp.eq.s32.totalorder %s15, 1
      %p116 = por %p114, %p115
      %p117 = scmp.ne.s32.totalorder %s109, %s112
      %p118 = scmp.eq.s32.totalorder %s15, 0
      %p119 = por %p117, %p118
      %p120 = scmp.ne.s32.totalorder %s109, %s112
      %p121 = scmp.eq.s32.totalorder %s20, 1
      %p122 = por %p120, %p121
      %p123 = scmp.ne.s32.totalorder %s112, %s113
      %p124 = scmp.eq.s32.totalorder %s20, 0
      %p125 = por %p123, %p124
      %p126 = scmp.ne.s32.totalorder %s112, %s113
      %p127 = scmp.eq.s32.totalorder %s21, 1
      %p128 = por %p126, %p127
      %p130 = scmp.ne.s32.totalorder %s113, %s129
      %p131 = scmp.eq.s32.totalorder %s21, 0
      %p132 = por %p130, %p131
      %p133 = scmp.le.s32.totalorder 1, %s15
      %p134 = scmp.lt.s32.totalorder %s15, 3
      %p135 = pnand %p133, %p134
      %p136 = pneg %p135
      // Predicated region
      $region9: #{tpu_custom_call.1} parent=5 // pred_check
        _
      $region10: #{tpu_custom_call.1} parent=5 // pred_check_branch
        %138 = sbr.rel (%p135) target = $region12
      $region11: #{tpu_custom_call.1} parent=5 // pred_region
        %s139 = ssub.s32 %s15, 1
        // Predicated region
        $region13: #{tpu_custom_call.1} parent=11 // pred_check
          %p140 = pneg %p48
        $region14: #{tpu_custom_call.1} parent=11 // pred_check_branch
          %142 = sbr.rel (%p140) target = $region16
        $region15: #{tpu_custom_call.1} parent=11 // pred_region
          _
        $region16: #{tpu_custom_call.1} parent=11 // pred_fallthru
          _
        // Predicated region
        $region17: #{tpu_custom_call.1} parent=11 // pred_check
          %p143 = pneg %p69
        $region18: #{tpu_custom_call.1} parent=11 // pred_check_branch
          %145 = sbr.rel (%p143) target = $region20
        $region19: #{tpu_custom_call.1} parent=11 // pred_region
          _
        $region20: #{tpu_custom_call.1} parent=11 // pred_fallthru
          _
      $region12: #{tpu_custom_call.1} parent=5 // pred_fallthru
        _
      %p146 = scmp.lt.s32.totalorder %s15, 2
      // Predicated region
      $region21: #{tpu_custom_call.1} parent=5 // pred_check
        %p147 = pneg %p146
      $region22: #{tpu_custom_call.1} parent=5 // pred_check_branch
        %149 = sbr.rel (%p147) target = $region24
      $region23: #{tpu_custom_call.1} parent=5 // pred_region
        // Predicated region
        $region25: #{tpu_custom_call.1} parent=23 // pred_check
          %p150 = pneg %p91
        $region26: #{tpu_custom_call.1} parent=23 // pred_check_branch
          %152 = sbr.rel (%p150) target = $region28
        $region27: #{tpu_custom_call.1} parent=23 // pred_region
          %s153 = sand.u32 %s81, 1
          %s154 = scalar_lea.sflag [#allocation3], %s153
          %s155 = sand.u32 %s81, 1
          %s156 = smul.addr %s155, 128
          %s157 = scalar_lea.vmem [#allocation2], %s156
          %s158 = smul.u32 16, %s23
          %160 = vsyncadd %s154, 0
          %s161 = smul.addr %s22, 32
          %s162 = sadd.s32 %s158, %s161
          %s163 = smul.addr %s162, 4
          %s164 = scalar_lea.hbm %s2, %s163
          %s165 = sshll.u32 %s164, 4
          %s166 = int_to_ptr.hbm [resolvable:$true] %s165
          %s167 = sshll.u32 %s157, 4
          %s168 = int_to_ptr.vmem [resolvable:$true] %s167
          %173 = dma.hbm_to_vmem [thread:$0]  %s166, 2048, %s168, %s154, 1024, 1024, 64
        $region28: #{tpu_custom_call.1} parent=23 // pred_fallthru
          _
      $region24: #{tpu_custom_call.1} parent=5 // pred_fallthru
        _
      %p174 = scmp.le.s32.totalorder 1, %s15
      %p175 = scmp.lt.s32.totalorder %s15, 3
      %p176 = pnand %p174, %p175
      %p177 = pneg %p176
      // Predicated region
      $region29: #{tpu_custom_call.1} parent=5 // pred_check
        _
      $region30: #{tpu_custom_call.1} parent=5 // pred_check_branch
        %179 = sbr.rel (%p176) target = $region32
      $region31: #{tpu_custom_call.1} parent=5 // pred_region
        %s180 = ssub.s32 %s15, 1
        %s181 = sand.u32 %s84, 1
        %s182 = scalar_lea.sflag [#allocation3], %s181
        %s183 = sand.u32 %s84, 1
        %s184 = smul.addr %s183, 128
        %s185 = scalar_lea.vmem [#allocation2], %s184
        // Predicated region
        $region33: #{tpu_custom_call.1} parent=31 // pred_check
          %p186 = pneg %p97
        $region34: #{tpu_custom_call.1} parent=31 // pred_check_branch
          %188 = sbr.rel (%p186) target = $region36
        $region35: #{tpu_custom_call.1} parent=31 // pred_region
          %190 = dma.done %s182, 2048
        $region36: #{tpu_custom_call.1} parent=31 // pred_fallthru
          _
        %p191 = pneg %p48
        %p192 = pneg %p45
        %p193 = pneg %p69
        %p194 = pneg %p66
        %s195 = sand.u32 %s84, 1
        %s196 = scalar_lea.sflag [#allocation3], %s195
        %s197 = sand.u32 %s84, 1
        %s198 = smul.addr %s197, 128
        %s199 = scalar_lea.vmem [#allocation2], %s198
        %p200 = pneg %p97
        %p201 = pneg %p94
        %p202 = pneg %p125
        %p203 = pneg %p122
        %s204 = sand.u32 %s112, 1
        %s205 = scalar_lea.sflag [#allocation4], %s204
        %s206 = sand.u32 %s112, 1
        %s207 = smul.addr %s206, 1024
        %s208 = scalar_lea.vmem [#allocation5], %s207
        %s209 = smul.u32 16, %s25
        %s210 = smul.u32 16, %s25
        %v212 = vld [vmem:[%s0] sm:$0xf]
        %v213 = vld [vmem:[%s0 + $0x4] sm:$0xf]
        %v214 = vld [vmem:[%s0 + $0x8] sm:$0xf]
        %v215 = vld [vmem:[%s0 + $0xc] sm:$0xf]
        %v216 = vld [vmem:[%s0 + $0x10] sm:$0xf]
        %v217 = vld [vmem:[%s0 + $0x14] sm:$0xf]
        %v218 = vld [vmem:[%s0 + $0x18] sm:$0xf]
        %v219 = vld [vmem:[%s0 + $0x1c] sm:$0xf]
        %v220 = vld [vmem:[%s185] sm:$0xff]
        %v221 = vld [vmem:[%s185 + $0x8] sm:$0xff]
        %v222 = vld [vmem:[%s185 + $0x10] sm:$0xff]
        %v223 = vld [vmem:[%s185 + $0x18] sm:$0xff]
        %v224 = vld [vmem:[%s185 + $0x20] sm:$0xff]
        %v225 = vld [vmem:[%s185 + $0x28] sm:$0xff]
        %v226 = vld [vmem:[%s185 + $0x30] sm:$0xff]
        %v227 = vld [vmem:[%s185 + $0x38] sm:$0xff]
        %v228 = vld [vmem:[%s185 + $0x40] sm:$0xff]
        %v229 = vld [vmem:[%s185 + $0x48] sm:$0xff]
        %v230 = vld [vmem:[%s185 + $0x50] sm:$0xff]
        %v231 = vld [vmem:[%s185 + $0x58] sm:$0xff]
        %v232 = vld [vmem:[%s185 + $0x60] sm:$0xff]
        %v233 = vld [vmem:[%s185 + $0x68] sm:$0xff]
        %v234 = vld [vmem:[%s185 + $0x70] sm:$0xff]
        %v235 = vld [vmem:[%s185 + $0x78] sm:$0xff]
        %v236 = vld [vmem:[%s1] sm:$0xff]
        %v237 = vld [vmem:[%s1 + $0x8] sm:$0xff]
        %v238 = vld [vmem:[%s1 + $0x10] sm:$0xff]
        %v239 = vld [vmem:[%s1 + $0x18] sm:$0xff]
        %v240 = vld [vmem:[%s1 + $0x20] sm:$0xff]
        %v241 = vld [vmem:[%s1 + $0x28] sm:$0xff]
        %v242 = vld [vmem:[%s1 + $0x30] sm:$0xff]
        %v243 = vld [vmem:[%s1 + $0x38] sm:$0xff]
        %245 = vset.pattern.permute.xlu0 0
        %246 = vperm.xlu0 %245, %v236
        %v247 = vpop.permute.xlu0 %246
        %250 = vset.pattern.permute.xlu0 0
        %251 = vperm.xlu0 %250, %v237
        %v252 = vpop.permute.xlu0 %251
        %255 = vset.pattern.permute.xlu0 0
        %256 = vperm.xlu0 %255, %v238
        %v257 = vpop.permute.xlu0 %256
        %260 = vset.pattern.permute.xlu0 0
        %261 = vperm.xlu0 %260, %v239
        %v262 = vpop.permute.xlu0 %261
        %265 = vset.pattern.permute.xlu0 0
        %266 = vperm.xlu0 %265, %v240
        %v267 = vpop.permute.xlu0 %266
        %270 = vset.pattern.permute.xlu0 0
        %271 = vperm.xlu0 %270, %v241
        %v272 = vpop.permute.xlu0 %271
        %275 = vset.pattern.permute.xlu0 0
        %276 = vperm.xlu0 %275, %v242
        %v277 = vpop.permute.xlu0 %276
        %280 = vset.pattern.permute.xlu0 0
        %281 = vperm.xlu0 %280, %v243
        %v282 = vpop.permute.xlu0 %281
        %v292 = vunpack.c.l.b16 %v212
        %v293 = vunpack.c.l.b16 %v213
        %v294 = vunpack.c.l.b16 %v214
        %v295 = vunpack.c.l.b16 %v215
        %v296 = vunpack.c.l.b16 %v216
        %v297 = vunpack.c.l.b16 %v217
        %v298 = vunpack.c.l.b16 %v218
        %v299 = vunpack.c.l.b16 %v219
        %v300 = vpack.c.b16 %v293, %v292
        %v301 = vpack.c.b16 %v295, %v294
        %v302 = vpack.c.b16 %v297, %v296
        %v303 = vpack.c.b16 %v299, %v298
        %v320 = vunpack.c.l.b16 %v220
        %v321 = vunpack.c.h.b16 %v220
        %v322 = vunpack.c.l.b16 %v221
        %v323 = vunpack.c.h.b16 %v221
        %v324 = vunpack.c.l.b16 %v222
        %v325 = vunpack.c.h.b16 %v222
        %v326 = vunpack.c.l.b16 %v223
        %v327 = vunpack.c.h.b16 %v223
        %v328 = vunpack.c.l.b16 %v224
        %v329 = vunpack.c.h.b16 %v224
        %v330 = vunpack.c.l.b16 %v225
        %v331 = vunpack.c.h.b16 %v225
        %v332 = vunpack.c.l.b16 %v226
        %v333 = vunpack.c.h.b16 %v226
        %v334 = vunpack.c.l.b16 %v227
        %v335 = vunpack.c.h.b16 %v227
        %v336 = vunpack.c.l.b16 %v228
        %v337 = vunpack.c.h.b16 %v228
        %v338 = vunpack.c.l.b16 %v229
        %v339 = vunpack.c.h.b16 %v229
        %v340 = vunpack.c.l.b16 %v230
        %v341 = vunpack.c.h.b16 %v230
        %v342 = vunpack.c.l.b16 %v231
        %v343 = vunpack.c.h.b16 %v231
        %v344 = vunpack.c.l.b16 %v232
        %v345 = vunpack.c.h.b16 %v232
        %v346 = vunpack.c.l.b16 %v233
        %v347 = vunpack.c.h.b16 %v233
        %v348 = vunpack.c.l.b16 %v234
        %v349 = vunpack.c.h.b16 %v234
        %v350 = vunpack.c.l.b16 %v235
        %v351 = vunpack.c.h.b16 %v235
        %v352 = vpack.c.b16 %v336, %v320
        %v353 = vpack.c.b16 %v337, %v321
        %v354 = vpack.c.b16 %v338, %v322
        %v355 = vpack.c.b16 %v339, %v323
        %v356 = vpack.c.b16 %v340, %v324
        %v357 = vpack.c.b16 %v341, %v325
        %v358 = vpack.c.b16 %v342, %v326
        %v359 = vpack.c.b16 %v343, %v327
        %v360 = vpack.c.b16 %v344, %v328
        %v361 = vpack.c.b16 %v345, %v329
        %v362 = vpack.c.b16 %v346, %v330
        %v363 = vpack.c.b16 %v347, %v331
        %v364 = vpack.c.b16 %v348, %v332
        %v365 = vpack.c.b16 %v349, %v333
        %v366 = vpack.c.b16 %v350, %v334
        %v367 = vpack.c.b16 %v351, %v335
        %vm384 = vcmask 130048
        %v386 = vsel %vm384, %v300, 0
        %v389 = vsel %vm384, %v301, 0
        %v392 = vsel %vm384, %v302, 0
        %v395 = vsel %vm384, %v303, 0
        %397 = vmatpush.bf16.msra.mxu0 0
        %398 = vmatpush.bf16.msra.mxu0 0
        %399 = vmatpush.bf16.msra.mxu0 0
        %400 = vmatpush.bf16.msra.mxu0 0
        %401 = vmatpush.bf16.msra.mxu0 0
        %402 = vmatpush.bf16.msra.mxu0 0
        %403 = vmatpush.bf16.msra.mxu0 0
        %404 = vmatpush.bf16.msra.mxu0 %v352
        %405 = vmatmul.bf16.gmra.mxu0 %v386
        %v406 = vpop.f32.mrf.mxu0
        %v407 = vadd.f32 %v247, %v406
        %v408 = vpop.f32.mrf.mxu0
        %v409 = vadd.f32 %v252, %v408
        %410 = vmatmul.bf16.gmra.mxu0 %v389
        %v411 = vpop.f32.mrf.mxu0
        %v412 = vadd.f32 %v257, %v411
        %v413 = vpop.f32.mrf.mxu0
        %v414 = vadd.f32 %v262, %v413
        %415 = vmatmul.bf16.gmra.mxu0 %v392
        %v416 = vpop.f32.mrf.mxu0
        %v417 = vadd.f32 %v267, %v416
        %v418 = vpop.f32.mrf.mxu0
        %v419 = vadd.f32 %v272, %v418
        %420 = vmatmul.bf16.gmra.mxu0 %v395
        %v421 = vpop.f32.mrf.mxu0
        %v422 = vadd.f32 %v277, %v421
        %v423 = vpop.f32.mrf.mxu0
        %v424 = vadd.f32 %v282, %v423
        %425 = vdwg.mxu0
        %426 = vmatpush.bf16.msra.mxu0 0
        %427 = vmatpush.bf16.msra.mxu0 0
        %428 = vmatpush.bf16.msra.mxu0 0
        %429 = vmatpush.bf16.msra.mxu0 0
        %430 = vmatpush.bf16.msra.mxu0 0
        %431 = vmatpush.bf16.msra.mxu0 0
        %432 = vmatpush.bf16.msra.mxu0 0
        %433 = vmatpush.bf16.msra.mxu0 %v353
        %434 = vmatmul.bf16.gmra.mxu0 %v386
        %v435 = vpop.f32.mrf.mxu0
        %v436 = vadd.f32 %v247, %v435
        %v437 = vpop.f32.mrf.mxu0
        %v438 = vadd.f32 %v252, %v437
        %439 = vmatmul.bf16.gmra.mxu0 %v389
        %v440 = vpop.f32.mrf.mxu0
        %v441 = vadd.f32 %v257, %v440
        %v442 = vpop.f32.mrf.mxu0
        %v443 = vadd.f32 %v262, %v442
        %444 = vmatmul.bf16.gmra.mxu0 %v392
        %v445 = vpop.f32.mrf.mxu0
        %v446 = vadd.f32 %v267, %v445
        %v447 = vpop.f32.mrf.mxu0
        %v448 = vadd.f32 %v272, %v447
        %449 = vmatmul.bf16.gmra.mxu0 %v395
        %v450 = vpop.f32.mrf.mxu0
        %v451 = vadd.f32 %v277, %v450
        %v452 = vpop.f32.mrf.mxu0
        %v453 = vadd.f32 %v282, %v452
        %454 = vdwg.mxu0
        %455 = vmatpush.bf16.msra.mxu0 0
        %456 = vmatpush.bf16.msra.mxu0 0
        %457 = vmatpush.bf16.msra.mxu0 0
        %458 = vmatpush.bf16.msra.mxu0 0
        %459 = vmatpush.bf16.msra.mxu0 0
        %460 = vmatpush.bf16.msra.mxu0 0
        %461 = vmatpush.bf16.msra.mxu0 0
        %462 = vmatpush.bf16.msra.mxu0 %v354
        %463 = vmatmul.bf16.gmra.mxu0 %v386
        %v464 = vpop.f32.mrf.mxu0
        %v465 = vadd.f32 %v247, %v464
        %v466 = vpop.f32.mrf.mxu0
        %v467 = vadd.f32 %v252, %v466
        %468 = vmatmul.bf16.gmra.mxu0 %v389
        %v469 = vpop.f32.mrf.mxu0
        %v470 = vadd.f32 %v257, %v469
        %v471 = vpop.f32.mrf.mxu0
        %v472 = vadd.f32 %v262, %v471
        %473 = vmatmul.bf16.gmra.mxu0 %v392
        %v474 = vpop.f32.mrf.mxu0
        %v475 = vadd.f32 %v267, %v474
        %v476 = vpop.f32.mrf.mxu0
        %v477 = vadd.f32 %v272, %v476
        %478 = vmatmul.bf16.gmra.mxu0 %v395
        %v479 = vpop.f32.mrf.mxu0
        %v480 = vadd.f32 %v277, %v479
        %v481 = vpop.f32.mrf.mxu0
        %v482 = vadd.f32 %v282, %v481
        %483 = vdwg.mxu0
        %484 = vmatpush.bf16.msra.mxu0 0
        %485 = vmatpush.bf16.msra.mxu0 0
        %486 = vmatpush.bf16.msra.mxu0 0
        %487 = vmatpush.bf16.msra.mxu0 0
        %488 = vmatpush.bf16.msra.mxu0 0
        %489 = vmatpush.bf16.msra.mxu0 0
        %490 = vmatpush.bf16.msra.mxu0 0
        %491 = vmatpush.bf16.msra.mxu0 %v355
        %492 = vmatmul.bf16.gmra.mxu0 %v386
        %v493 = vpop.f32.mrf.mxu0
        %v494 = vadd.f32 %v247, %v493
        %v495 = vpop.f32.mrf.mxu0
        %v496 = vadd.f32 %v252, %v495
        %497 = vmatmul.bf16.gmra.mxu0 %v389
        %v498 = vpop.f32.mrf.mxu0
        %v499 = vadd.f32 %v257, %v498
        %v500 = vpop.f32.mrf.mxu0
        %v501 = vadd.f32 %v262, %v500
        %502 = vmatmul.bf16.gmra.mxu0 %v392
        %v503 = vpop.f32.mrf.mxu0
        %v504 = vadd.f32 %v267, %v503
        %v505 = vpop.f32.mrf.mxu0
        %v506 = vadd.f32 %v272, %v505
        %507 = vmatmul.bf16.gmra.mxu0 %v395
        %v508 = vpop.f32.mrf.mxu0
        %v509 = vadd.f32 %v277, %v508
        %v510 = vpop.f32.mrf.mxu0
        %v511 = vadd.f32 %v282, %v510
        %512 = vdwg.mxu0
        %513 = vmatpush.bf16.msra.mxu0 0
        %514 = vmatpush.bf16.msra.mxu0 0
        %515 = vmatpush.bf16.msra.mxu0 0
        %516 = vmatpush.bf16.msra.mxu0 0
        %517 = vmatpush.bf16.msra.mxu0 0
        %518 = vmatpush.bf16.msra.mxu0 0
        %519 = vmatpush.bf16.msra.mxu0 0
        %520 = vmatpush.bf16.msra.mxu0 %v356
        %521 = vmatmul.bf16.gmra.mxu0 %v386
        %v522 = vpop.f32.mrf.mxu0
        %v523 = vadd.f32 %v247, %v522
        %v524 = vpop.f32.mrf.mxu0
        %v525 = vadd.f32 %v252, %v524
        %526 = vmatmul.bf16.gmra.mxu0 %v389
        %v527 = vpop.f32.mrf.mxu0
        %v528 = vadd.f32 %v257, %v527
        %v529 = vpop.f32.mrf.mxu0
        %v530 = vadd.f32 %v262, %v529
        %531 = vmatmul.bf16.gmra.mxu0 %v392
        %v532 = vpop.f32.mrf.mxu0
        %v533 = vadd.f32 %v267, %v532
        %v534 = vpop.f32.mrf.mxu0
        %v535 = vadd.f32 %v272, %v534
        %536 = vmatmul.bf16.gmra.mxu0 %v395
        %v537 = vpop.f32.mrf.mxu0
        %v538 = vadd.f32 %v277, %v537
        %v539 = vpop.f32.mrf.mxu0
        %v540 = vadd.f32 %v282, %v539
        %541 = vdwg.mxu0
        %542 = vmatpush.bf16.msra.mxu0 0
        %543 = vmatpush.bf16.msra.mxu0 0
        %544 = vmatpush.bf16.msra.mxu0 0
        %545 = vmatpush.bf16.msra.mxu0 0
        %546 = vmatpush.bf16.msra.mxu0 0
        %547 = vmatpush.bf16.msra.mxu0 0
        %548 = vmatpush.bf16.msra.mxu0 0
        %549 = vmatpush.bf16.msra.mxu0 %v357
        %550 = vmatmul.bf16.gmra.mxu0 %v386
        %v551 = vpop.f32.mrf.mxu0
        %v552 = vadd.f32 %v247, %v551
        %v553 = vpop.f32.mrf.mxu0
        %v554 = vadd.f32 %v252, %v553
        %555 = vmatmul.bf16.gmra.mxu0 %v389
        %v556 = vpop.f32.mrf.mxu0
        %v557 = vadd.f32 %v257, %v556
        %v558 = vpop.f32.mrf.mxu0
        %v559 = vadd.f32 %v262, %v558
        %560 = vmatmul.bf16.gmra.mxu0 %v392
        %v561 = vpop.f32.mrf.mxu0
        %v562 = vadd.f32 %v267, %v561
        %v563 = vpop.f32.mrf.mxu0
        %v564 = vadd.f32 %v272, %v563
        %565 = vmatmul.bf16.gmra.mxu0 %v395
        %v566 = vpop.f32.mrf.mxu0
        %v567 = vadd.f32 %v277, %v566
        %v568 = vpop.f32.mrf.mxu0
        %v569 = vadd.f32 %v282, %v568
        %570 = vdwg.mxu0
        %571 = vmatpush.bf16.msra.mxu0 0
        %572 = vmatpush.bf16.msra.mxu0 0
        %573 = vmatpush.bf16.msra.mxu0 0
        %574 = vmatpush.bf16.msra.mxu0 0
        %575 = vmatpush.bf16.msra.mxu0 0
        %576 = vmatpush.bf16.msra.mxu0 0
        %577 = vmatpush.bf16.msra.mxu0 0
        %578 = vmatpush.bf16.msra.mxu0 %v358
        %579 = vmatmul.bf16.gmra.mxu0 %v386
        %v580 = vpop.f32.mrf.mxu0
        %v581 = vadd.f32 %v247, %v580
        %v582 = vpop.f32.mrf.mxu0
        %v583 = vadd.f32 %v252, %v582
        %584 = vmatmul.bf16.gmra.mxu0 %v389
        %v585 = vpop.f32.mrf.mxu0
        %v586 = vadd.f32 %v257, %v585
        %v587 = vpop.f32.mrf.mxu0
        %v588 = vadd.f32 %v262, %v587
        %589 = vmatmul.bf16.gmra.mxu0 %v392
        %v590 = vpop.f32.mrf.mxu0
        %v591 = vadd.f32 %v267, %v590
        %v592 = vpop.f32.mrf.mxu0
        %v593 = vadd.f32 %v272, %v592
        %594 = vmatmul.bf16.gmra.mxu0 %v395
        %v595 = vpop.f32.mrf.mxu0
        %v596 = vadd.f32 %v277, %v595
        %v597 = vpop.f32.mrf.mxu0
        %v598 = vadd.f32 %v282, %v597
        %599 = vdwg.mxu0
        %600 = vmatpush.bf16.msra.mxu0 0
        %601 = vmatpush.bf16.msra.mxu0 0
        %602 = vmatpush.bf16.msra.mxu0 0
        %603 = vmatpush.bf16.msra.mxu0 0
        %604 = vmatpush.bf16.msra.mxu0 0
        %605 = vmatpush.bf16.msra.mxu0 0
        %606 = vmatpush.bf16.msra.mxu0 0
        %607 = vmatpush.bf16.msra.mxu0 %v359
        %608 = vmatmul.bf16.gmra.mxu0 %v386
        %v609 = vpop.f32.mrf.mxu0
        %v610 = vadd.f32 %v247, %v609
        %v611 = vpop.f32.mrf.mxu0
        %v612 = vadd.f32 %v252, %v611
        %613 = vmatmul.bf16.gmra.mxu0 %v389
        %v614 = vpop.f32.mrf.mxu0
        %v615 = vadd.f32 %v257, %v614
        %v616 = vpop.f32.mrf.mxu0
        %v617 = vadd.f32 %v262, %v616
        %618 = vmatmul.bf16.gmra.mxu0 %v392
        %v619 = vpop.f32.mrf.mxu0
        %v620 = vadd.f32 %v267, %v619
        %v621 = vpop.f32.mrf.mxu0
        %v622 = vadd.f32 %v272, %v621
        %623 = vmatmul.bf16.gmra.mxu0 %v395
        %v624 = vpop.f32.mrf.mxu0
        %v625 = vadd.f32 %v277, %v624
        %v626 = vpop.f32.mrf.mxu0
        %v627 = vadd.f32 %v282, %v626
        %628 = vdwg.mxu0
        %629 = vmatpush.bf16.msra.mxu0 0
        %630 = vmatpush.bf16.msra.mxu0 0
        %631 = vmatpush.bf16.msra.mxu0 0
        %632 = vmatpush.bf16.msra.mxu0 0
        %633 = vmatpush.bf16.msra.mxu0 0
        %634 = vmatpush.bf16.msra.mxu0 0
        %635 = vmatpush.bf16.msra.mxu0 0
        %636 = vmatpush.bf16.msra.mxu0 %v360
        %637 = vmatmul.bf16.gmra.mxu0 %v386
        %v638 = vpop.f32.mrf.mxu0
        %v639 = vadd.f32 %v247, %v638
        %v640 = vpop.f32.mrf.mxu0
        %v641 = vadd.f32 %v252, %v640
        %642 = vmatmul.bf16.gmra.mxu0 %v389
        %v643 = vpop.f32.mrf.mxu0
        %v644 = vadd.f32 %v257, %v643
        %v645 = vpop.f32.mrf.mxu0
        %v646 = vadd.f32 %v262, %v645
        %647 = vmatmul.bf16.gmra.mxu0 %v392
        %v648 = vpop.f32.mrf.mxu0
        %v649 = vadd.f32 %v267, %v648
        %v650 = vpop.f32.mrf.mxu0
        %v651 = vadd.f32 %v272, %v650
        %652 = vmatmul.bf16.gmra.mxu0 %v395
        %v653 = vpop.f32.mrf.mxu0
        %v654 = vadd.f32 %v277, %v653
        %v655 = vpop.f32.mrf.mxu0
        %v656 = vadd.f32 %v282, %v655
        %657 = vdwg.mxu0
        %658 = vmatpush.bf16.msra.mxu0 0
        %659 = vmatpush.bf16.msra.mxu0 0
        %660 = vmatpush.bf16.msra.mxu0 0
        %661 = vmatpush.bf16.msra.mxu0 0
        %662 = vmatpush.bf16.msra.mxu0 0
        %663 = vmatpush.bf16.msra.mxu0 0
        %664 = vmatpush.bf16.msra.mxu0 0
        %665 = vmatpush.bf16.msra.mxu0 %v361
        %666 = vmatmul.bf16.gmra.mxu0 %v386
        %v667 = vpop.f32.mrf.mxu0
        %v668 = vadd.f32 %v247, %v667
        %v669 = vpop.f32.mrf.mxu0
        %v670 = vadd.f32 %v252, %v669
        %671 = vmatmul.bf16.gmra.mxu0 %v389
        %v672 = vpop.f32.mrf.mxu0
        %v673 = vadd.f32 %v257, %v672
        %v674 = vpop.f32.mrf.mxu0
        %v675 = vadd.f32 %v262, %v674
        %676 = vmatmul.bf16.gmra.mxu0 %v392
        %v677 = vpop.f32.mrf.mxu0
        %v678 = vadd.f32 %v267, %v677
        %v679 = vpop.f32.mrf.mxu0
        %v680 = vadd.f32 %v272, %v679
        %681 = vmatmul.bf16.gmra.mxu0 %v395
        %v682 = vpop.f32.mrf.mxu0
        %v683 = vadd.f32 %v277, %v682
        %v684 = vpop.f32.mrf.mxu0
        %v685 = vadd.f32 %v282, %v684
        %686 = vdwg.mxu0
        %687 = vmatpush.bf16.msra.mxu0 0
        %688 = vmatpush.bf16.msra.mxu0 0
        %689 = vmatpush.bf16.msra.mxu0 0
        %690 = vmatpush.bf16.msra.mxu0 0
        %691 = vmatpush.bf16.msra.mxu0 0
        %692 = vmatpush.bf16.msra.mxu0 0
        %693 = vmatpush.bf16.msra.mxu0 0
        %694 = vmatpush.bf16.msra.mxu0 %v362
        %695 = vmatmul.bf16.gmra.mxu0 %v386
        %v696 = vpop.f32.mrf.mxu0
        %v697 = vadd.f32 %v247, %v696
        %v698 = vpop.f32.mrf.mxu0
        %v699 = vadd.f32 %v252, %v698
        %700 = vmatmul.bf16.gmra.mxu0 %v389
        %v701 = vpop.f32.mrf.mxu0
        %v702 = vadd.f32 %v257, %v701
        %v703 = vpop.f32.mrf.mxu0
        %v704 = vadd.f32 %v262, %v703
        %705 = vmatmul.bf16.gmra.mxu0 %v392
        %v706 = vpop.f32.mrf.mxu0
        %v707 = vadd.f32 %v267, %v706
        %v708 = vpop.f32.mrf.mxu0
        %v709 = vadd.f32 %v272, %v708
        %710 = vmatmul.bf16.gmra.mxu0 %v395
        %v711 = vpop.f32.mrf.mxu0
        %v712 = vadd.f32 %v277, %v711
        %v713 = vpop.f32.mrf.mxu0
        %v714 = vadd.f32 %v282, %v713
        %715 = vdwg.mxu0
        %716 = vmatpush.bf16.msra.mxu0 0
        %717 = vmatpush.bf16.msra.mxu0 0
        %718 = vmatpush.bf16.msra.mxu0 0
        %719 = vmatpush.bf16.msra.mxu0 0
        %720 = vmatpush.bf16.msra.mxu0 0
        %721 = vmatpush.bf16.msra.mxu0 0
        %722 = vmatpush.bf16.msra.mxu0 0
        %723 = vmatpush.bf16.msra.mxu0 %v363
        %724 = vmatmul.bf16.gmra.mxu0 %v386
        %v725 = vpop.f32.mrf.mxu0
        %v726 = vadd.f32 %v247, %v725
        %v727 = vpop.f32.mrf.mxu0
        %v728 = vadd.f32 %v252, %v727
        %729 = vmatmul.bf16.gmra.mxu0 %v389
        %v730 = vpop.f32.mrf.mxu0
        %v731 = vadd.f32 %v257, %v730
        %v732 = vpop.f32.mrf.mxu0
        %v733 = vadd.f32 %v262, %v732
        %734 = vmatmul.bf16.gmra.mxu0 %v392
        %v735 = vpop.f32.mrf.mxu0
        %v736 = vadd.f32 %v267, %v735
        %v737 = vpop.f32.mrf.mxu0
        %v738 = vadd.f32 %v272, %v737
        %739 = vmatmul.bf16.gmra.mxu0 %v395
        %v740 = vpop.f32.mrf.mxu0
        %v741 = vadd.f32 %v277, %v740
        %v742 = vpop.f32.mrf.mxu0
        %v743 = vadd.f32 %v282, %v742
        %744 = vdwg.mxu0
        %745 = vmatpush.bf16.msra.mxu0 0
        %746 = vmatpush.bf16.msra.mxu0 0
        %747 = vmatpush.bf16.msra.mxu0 0
        %748 = vmatpush.bf16.msra.mxu0 0
        %749 = vmatpush.bf16.msra.mxu0 0
        %750 = vmatpush.bf16.msra.mxu0 0
        %751 = vmatpush.bf16.msra.mxu0 0
        %752 = vmatpush.bf16.msra.mxu0 %v364
        %753 = vmatmul.bf16.gmra.mxu0 %v386
        %v754 = vpop.f32.mrf.mxu0
        %v755 = vadd.f32 %v247, %v754
        %v756 = vpop.f32.mrf.mxu0
        %v757 = vadd.f32 %v252, %v756
        %758 = vmatmul.bf16.gmra.mxu0 %v389
        %v759 = vpop.f32.mrf.mxu0
        %v760 = vadd.f32 %v257, %v759
        %v761 = vpop.f32.mrf.mxu0
        %v762 = vadd.f32 %v262, %v761
        %763 = vmatmul.bf16.gmra.mxu0 %v392
        %v764 = vpop.f32.mrf.mxu0
        %v765 = vadd.f32 %v267, %v764
        %v766 = vpop.f32.mrf.mxu0
        %v767 = vadd.f32 %v272, %v766
        %768 = vmatmul.bf16.gmra.mxu0 %v395
        %v769 = vpop.f32.mrf.mxu0
        %v770 = vadd.f32 %v277, %v769
        %v771 = vpop.f32.mrf.mxu0
        %v772 = vadd.f32 %v282, %v771
        %773 = vdwg.mxu0
        %774 = vmatpush.bf16.msra.mxu0 0
        %775 = vmatpush.bf16.msra.mxu0 0
        %776 = vmatpush.bf16.msra.mxu0 0
        %777 = vmatpush.bf16.msra.mxu0 0
        %778 = vmatpush.bf16.msra.mxu0 0
        %779 = vmatpush.bf16.msra.mxu0 0
        %780 = vmatpush.bf16.msra.mxu0 0
        %781 = vmatpush.bf16.msra.mxu0 %v365
        %782 = vmatmul.bf16.gmra.mxu0 %v386
        %v783 = vpop.f32.mrf.mxu0
        %v784 = vadd.f32 %v247, %v783
        %v785 = vpop.f32.mrf.mxu0
        %v786 = vadd.f32 %v252, %v785
        %787 = vmatmul.bf16.gmra.mxu0 %v389
        %v788 = vpop.f32.mrf.mxu0
        %v789 = vadd.f32 %v257, %v788
        %v790 = vpop.f32.mrf.mxu0
        %v791 = vadd.f32 %v262, %v790
        %792 = vmatmul.bf16.gmra.mxu0 %v392
        %v793 = vpop.f32.mrf.mxu0
        %v794 = vadd.f32 %v267, %v793
        %v795 = vpop.f32.mrf.mxu0
        %v796 = vadd.f32 %v272, %v795
        %797 = vmatmul.bf16.gmra.mxu0 %v395
        %v798 = vpop.f32.mrf.mxu0
        %v799 = vadd.f32 %v277, %v798
        %v800 = vpop.f32.mrf.mxu0
        %v801 = vadd.f32 %v282, %v800
        %802 = vdwg.mxu0
        %803 = vmatpush.bf16.msra.mxu0 0
        %804 = vmatpush.bf16.msra.mxu0 0
        %805 = vmatpush.bf16.msra.mxu0 0
        %806 = vmatpush.bf16.msra.mxu0 0
        %807 = vmatpush.bf16.msra.mxu0 0
        %808 = vmatpush.bf16.msra.mxu0 0
        %809 = vmatpush.bf16.msra.mxu0 0
        %810 = vmatpush.bf16.msra.mxu0 %v366
        %811 = vmatmul.bf16.gmra.mxu0 %v386
        %v812 = vpop.f32.mrf.mxu0
        %v813 = vadd.f32 %v247, %v812
        %v814 = vpop.f32.mrf.mxu0
        %v815 = vadd.f32 %v252, %v814
        %816 = vmatmul.bf16.gmra.mxu0 %v389
        %v817 = vpop.f32.mrf.mxu0
        %v818 = vadd.f32 %v257, %v817
        %v819 = vpop.f32.mrf.mxu0
        %v820 = vadd.f32 %v262, %v819
        %821 = vmatmul.bf16.gmra.mxu0 %v392
        %v822 = vpop.f32.mrf.mxu0
        %v823 = vadd.f32 %v267, %v822
        %v824 = vpop.f32.mrf.mxu0
        %v825 = vadd.f32 %v272, %v824
        %826 = vmatmul.bf16.gmra.mxu0 %v395
        %v827 = vpop.f32.mrf.mxu0
        %v828 = vadd.f32 %v277, %v827
        %v829 = vpop.f32.mrf.mxu0
        %v830 = vadd.f32 %v282, %v829
        %831 = vdwg.mxu0
        %832 = vmatpush.bf16.msra.mxu0 0
        %833 = vmatpush.bf16.msra.mxu0 0
        %834 = vmatpush.bf16.msra.mxu0 0
        %835 = vmatpush.bf16.msra.mxu0 0
        %836 = vmatpush.bf16.msra.mxu0 0
        %837 = vmatpush.bf16.msra.mxu0 0
        %838 = vmatpush.bf16.msra.mxu0 0
        %839 = vmatpush.bf16.msra.mxu0 %v367
        %840 = vmatmul.bf16.gmra.mxu0 %v386
        %v841 = vpop.f32.mrf.mxu0
        %v842 = vadd.f32 %v247, %v841
        %v843 = vpop.f32.mrf.mxu0
        %v844 = vadd.f32 %v252, %v843
        %845 = vmatmul.bf16.gmra.mxu0 %v389
        %v846 = vpop.f32.mrf.mxu0
        %v847 = vadd.f32 %v257, %v846
        %v848 = vpop.f32.mrf.mxu0
        %v849 = vadd.f32 %v262, %v848
        %850 = vmatmul.bf16.gmra.mxu0 %v392
        %v851 = vpop.f32.mrf.mxu0
        %v852 = vadd.f32 %v267, %v851
        %v853 = vpop.f32.mrf.mxu0
        %v854 = vadd.f32 %v272, %v853
        %855 = vmatmul.bf16.gmra.mxu0 %v395
        %v856 = vpop.f32.mrf.mxu0
        %v857 = vadd.f32 %v277, %v856
        %v858 = vpop.f32.mrf.mxu0
        %v859 = vadd.f32 %v282, %v858
        %860 = vdwg.mxu0
        %vm861 = vcmp.ge.f32.partialorder %v407, 0.0
        %vm862 = vcmp.ge.f32.partialorder %v436, 0.0
        %vm863 = vcmp.ge.f32.partialorder %v465, 0.0
        %vm864 = vcmp.ge.f32.partialorder %v494, 0.0
        %vm865 = vcmp.ge.f32.partialorder %v523, 0.0
        %vm866 = vcmp.ge.f32.partialorder %v552, 0.0
        %vm867 = vcmp.ge.f32.partialorder %v581, 0.0
        %vm868 = vcmp.ge.f32.partialorder %v610, 0.0
        %vm869 = vcmp.ge.f32.partialorder %v639, 0.0
        %vm870 = vcmp.ge.f32.partialorder %v668, 0.0
        %vm871 = vcmp.ge.f32.partialorder %v697, 0.0
        %vm872 = vcmp.ge.f32.partialorder %v726, 0.0
        %vm873 = vcmp.ge.f32.partialorder %v755, 0.0
        %vm874 = vcmp.ge.f32.partialorder %v784, 0.0
        %vm875 = vcmp.ge.f32.partialorder %v813, 0.0
        %vm876 = vcmp.ge.f32.partialorder %v842, 0.0
        %vm877 = vcmp.ge.f32.partialorder %v409, 0.0
        %vm878 = vcmp.ge.f32.partialorder %v438, 0.0
        %vm879 = vcmp.ge.f32.partialorder %v467, 0.0
        %vm880 = vcmp.ge.f32.partialorder %v496, 0.0
        %vm881 = vcmp.ge.f32.partialorder %v525, 0.0
        %vm882 = vcmp.ge.f32.partialorder %v554, 0.0
        %vm883 = vcmp.ge.f32.partialorder %v583, 0.0
        %vm884 = vcmp.ge.f32.partialorder %v612, 0.0
        %vm885 = vcmp.ge.f32.partialorder %v641, 0.0
        %vm886 = vcmp.ge.f32.partialorder %v670, 0.0
        %vm887 = vcmp.ge.f32.partialorder %v699, 0.0
        %vm888 = vcmp.ge.f32.partialorder %v728, 0.0
        %vm889 = vcmp.ge.f32.partialorder %v757, 0.0
        %vm890 = vcmp.ge.f32.partialorder %v786, 0.0
        %vm891 = vcmp.ge.f32.partialorder %v815, 0.0
        %vm892 = vcmp.ge.f32.partialorder %v844, 0.0
        %vm893 = vcmp.ge.f32.partialorder %v412, 0.0
        %vm894 = vcmp.ge.f32.partialorder %v441, 0.0
        %vm895 = vcmp.ge.f32.partialorder %v470, 0.0
        %vm896 = vcmp.ge.f32.partialorder %v499, 0.0
        %vm897 = vcmp.ge.f32.partialorder %v528, 0.0
        %vm898 = vcmp.ge.f32.partialorder %v557, 0.0
        %vm899 = vcmp.ge.f32.partialorder %v586, 0.0
        %vm900 = vcmp.ge.f32.partialorder %v615, 0.0
        %vm901 = vcmp.ge.f32.partialorder %v644, 0.0
        %vm902 = vcmp.ge.f32.partialorder %v673, 0.0
        %vm903 = vcmp.ge.f32.partialorder %v702, 0.0
        %vm904 = vcmp.ge.f32.partialorder %v731, 0.0
        %vm905 = vcmp.ge.f32.partialorder %v760, 0.0
        %vm906 = vcmp.ge.f32.partialorder %v789, 0.0
        %vm907 = vcmp.ge.f32.partialorder %v818, 0.0
        %vm908 = vcmp.ge.f32.partialorder %v847, 0.0
        %vm909 = vcmp.ge.f32.partialorder %v414, 0.0
        %vm910 = vcmp.ge.f32.partialorder %v443, 0.0
        %vm911 = vcmp.ge.f32.partialorder %v472, 0.0
        %vm912 = vcmp.ge.f32.partialorder %v501, 0.0
        %vm913 = vcmp.ge.f32.partialorder %v530, 0.0
        %vm914 = vcmp.ge.f32.partialorder %v559, 0.0
        %vm915 = vcmp.ge.f32.partialorder %v588, 0.0
        %vm916 = vcmp.ge.f32.partialorder %v617, 0.0
        %vm917 = vcmp.ge.f32.partialorder %v646, 0.0
        %vm918 = vcmp.ge.f32.partialorder %v675, 0.0
        %vm919 = vcmp.ge.f32.partialorder %v704, 0.0
        %vm920 = vcmp.ge.f32.partialorder %v733, 0.0
        %vm921 = vcmp.ge.f32.partialorder %v762, 0.0
        %vm922 = vcmp.ge.f32.partialorder %v791, 0.0
        %vm923 = vcmp.ge.f32.partialorder %v820, 0.0
        %vm924 = vcmp.ge.f32.partialorder %v849, 0.0
        %vm925 = vcmp.ge.f32.partialorder %v417, 0.0
        %vm926 = vcmp.ge.f32.partialorder %v446, 0.0
        %vm927 = vcmp.ge.f32.partialorder %v475, 0.0
        %vm928 = vcmp.ge.f32.partialorder %v504, 0.0
        %vm929 = vcmp.ge.f32.partialorder %v533, 0.0
        %vm930 = vcmp.ge.f32.partialorder %v562, 0.0
        %vm931 = vcmp.ge.f32.partialorder %v591, 0.0
        %vm932 = vcmp.ge.f32.partialorder %v620, 0.0
        %vm933 = vcmp.ge.f32.partialorder %v649, 0.0
        %vm934 = vcmp.ge.f32.partialorder %v678, 0.0
        %vm935 = vcmp.ge.f32.partialorder %v707, 0.0
        %vm936 = vcmp.ge.f32.partialorder %v736, 0.0
        %vm937 = vcmp.ge.f32.partialorder %v765, 0.0
        %vm938 = vcmp.ge.f32.partialorder %v794, 0.0
        %vm939 = vcmp.ge.f32.partialorder %v823, 0.0
        %vm940 = vcmp.ge.f32.partialorder %v852, 0.0
        %vm941 = vcmp.ge.f32.partialorder %v419, 0.0
        %vm942 = vcmp.ge.f32.partialorder %v448, 0.0
        %vm943 = vcmp.ge.f32.partialorder %v477, 0.0
        %vm944 = vcmp.ge.f32.partialorder %v506, 0.0
        %vm945 = vcmp.ge.f32.partialorder %v535, 0.0
        %vm946 = vcmp.ge.f32.partialorder %v564, 0.0
        %vm947 = vcmp.ge.f32.partialorder %v593, 0.0
        %vm948 = vcmp.ge.f32.partialorder %v622, 0.0
        %vm949 = vcmp.ge.f32.partialorder %v651, 0.0
        %vm950 = vcmp.ge.f32.partialorder %v680, 0.0
        %vm951 = vcmp.ge.f32.partialorder %v709, 0.0
        %vm952 = vcmp.ge.f32.partialorder %v738, 0.0
        %vm953 = vcmp.ge.f32.partialorder %v767, 0.0
        %vm954 = vcmp.ge.f32.partialorder %v796, 0.0
        %vm955 = vcmp.ge.f32.partialorder %v825, 0.0
        %vm956 = vcmp.ge.f32.partialorder %v854, 0.0
        %vm957 = vcmp.ge.f32.partialorder %v422, 0.0
        %vm958 = vcmp.ge.f32.partialorder %v451, 0.0
        %vm959 = vcmp.ge.f32.partialorder %v480, 0.0
        %vm960 = vcmp.ge.f32.partialorder %v509, 0.0
        %vm961 = vcmp.ge.f32.partialorder %v538, 0.0
        %vm962 = vcmp.ge.f32.partialorder %v567, 0.0
        %vm963 = vcmp.ge.f32.partialorder %v596, 0.0
        %vm964 = vcmp.ge.f32.partialorder %v625, 0.0
        %vm965 = vcmp.ge.f32.partialorder %v654, 0.0
        %vm966 = vcmp.ge.f32.partialorder %v683, 0.0
        %vm967 = vcmp.ge.f32.partialorder %v712, 0.0
        %vm968 = vcmp.ge.f32.partialorder %v741, 0.0
        %vm969 = vcmp.ge.f32.partialorder %v770, 0.0
        %vm970 = vcmp.ge.f32.partialorder %v799, 0.0
        %vm971 = vcmp.ge.f32.partialorder %v828, 0.0
        %vm972 = vcmp.ge.f32.partialorder %v857, 0.0
        %vm973 = vcmp.ge.f32.partialorder %v424, 0.0
        %vm974 = vcmp.ge.f32.partialorder %v453, 0.0
        %vm975 = vcmp.ge.f32.partialorder %v482, 0.0
        %vm976 = vcmp.ge.f32.partialorder %v511, 0.0
        %vm977 = vcmp.ge.f32.partialorder %v540, 0.0
        %vm978 = vcmp.ge.f32.partialorder %v569, 0.0
        %vm979 = vcmp.ge.f32.partialorder %v598, 0.0
        %vm980 = vcmp.ge.f32.partialorder %v627, 0.0
        %vm981 = vcmp.ge.f32.partialorder %v656, 0.0
        %vm982 = vcmp.ge.f32.partialorder %v685, 0.0
        %vm983 = vcmp.ge.f32.partialorder %v714, 0.0
        %vm984 = vcmp.ge.f32.partialorder %v743, 0.0
        %vm985 = vcmp.ge.f32.partialorder %v772, 0.0
        %vm986 = vcmp.ge.f32.partialorder %v801, 0.0
        %vm987 = vcmp.ge.f32.partialorder %v830, 0.0
        %vm988 = vcmp.ge.f32.partialorder %v859, 0.0
        %v989 = vmul.f32 %v407, 0.2
        %v990 = vmul.f32 %v436, 0.2
        %v991 = vmul.f32 %v465, 0.2
        %v992 = vmul.f32 %v494, 0.2
        %v993 = vmul.f32 %v523, 0.2
        %v994 = vmul.f32 %v552, 0.2
        %v995 = vmul.f32 %v581, 0.2
        %v996 = vmul.f32 %v610, 0.2
        %v997 = vmul.f32 %v639, 0.2
        %v998 = vmul.f32 %v668, 0.2
        %v999 = vmul.f32 %v697, 0.2
        %v1000 = vmul.f32 %v726, 0.2
        %v1001 = vmul.f32 %v755, 0.2
        %v1002 = vmul.f32 %v784, 0.2
        %v1003 = vmul.f32 %v813, 0.2
        %v1004 = vmul.f32 %v842, 0.2
        %v1005 = vmul.f32 %v409, 0.2
        %v1006 = vmul.f32 %v438, 0.2
        %v1007 = vmul.f32 %v467, 0.2
        %v1008 = vmul.f32 %v496, 0.2
        %v1009 = vmul.f32 %v525, 0.2
        %v1010 = vmul.f32 %v554, 0.2
        %v1011 = vmul.f32 %v583, 0.2
        %v1012 = vmul.f32 %v612, 0.2
        %v1013 = vmul.f32 %v641, 0.2
        %v1014 = vmul.f32 %v670, 0.2
        %v1015 = vmul.f32 %v699, 0.2
        %v1016 = vmul.f32 %v728, 0.2
        %v1017 = vmul.f32 %v757, 0.2
        %v1018 = vmul.f32 %v786, 0.2
        %v1019 = vmul.f32 %v815, 0.2
        %v1020 = vmul.f32 %v844, 0.2
        %v1021 = vmul.f32 %v412, 0.2
        %v1022 = vmul.f32 %v441, 0.2
        %v1023 = vmul.f32 %v470, 0.2
        %v1024 = vmul.f32 %v499, 0.2
        %v1025 = vmul.f32 %v528, 0.2
        %v1026 = vmul.f32 %v557, 0.2
        %v1027 = vmul.f32 %v586, 0.2
        %v1028 = vmul.f32 %v615, 0.2
        %v1029 = vmul.f32 %v644, 0.2
        %v1030 = vmul.f32 %v673, 0.2
        %v1031 = vmul.f32 %v702, 0.2
        %v1032 = vmul.f32 %v731, 0.2
        %v1033 = vmul.f32 %v760, 0.2
        %v1034 = vmul.f32 %v789, 0.2
        %v1035 = vmul.f32 %v818, 0.2
        %v1036 = vmul.f32 %v847, 0.2
        %v1037 = vmul.f32 %v414, 0.2
        %v1038 = vmul.f32 %v443, 0.2
        %v1039 = vmul.f32 %v472, 0.2
        %v1040 = vmul.f32 %v501, 0.2
        %v1041 = vmul.f32 %v530, 0.2
        %v1042 = vmul.f32 %v559, 0.2
        %v1043 = vmul.f32 %v588, 0.2
        %v1044 = vmul.f32 %v617, 0.2
        %v1045 = vmul.f32 %v646, 0.2
        %v1046 = vmul.f32 %v675, 0.2
        %v1047 = vmul.f32 %v704, 0.2
        %v1048 = vmul.f32 %v733, 0.2
        %v1049 = vmul.f32 %v762, 0.2
        %v1050 = vmul.f32 %v791, 0.2
        %v1051 = vmul.f32 %v820, 0.2
        %v1052 = vmul.f32 %v849, 0.2
        %v1053 = vmul.f32 %v417, 0.2
        %v1054 = vmul.f32 %v446, 0.2
        %v1055 = vmul.f32 %v475, 0.2
        %v1056 = vmul.f32 %v504, 0.2
        %v1057 = vmul.f32 %v533, 0.2
        %v1058 = vmul.f32 %v562, 0.2
        %v1059 = vmul.f32 %v591, 0.2
        %v1060 = vmul.f32 %v620, 0.2
        %v1061 = vmul.f32 %v649, 0.2
        %v1062 = vmul.f32 %v678, 0.2
        %v1063 = vmul.f32 %v707, 0.2
        %v1064 = vmul.f32 %v736, 0.2
        %v1065 = vmul.f32 %v765, 0.2
        %v1066 = vmul.f32 %v794, 0.2
        %v1067 = vmul.f32 %v823, 0.2
        %v1068 = vmul.f32 %v852, 0.2
        %v1069 = vmul.f32 %v419, 0.2
        %v1070 = vmul.f32 %v448, 0.2
        %v1071 = vmul.f32 %v477, 0.2
        %v1072 = vmul.f32 %v506, 0.2
        %v1073 = vmul.f32 %v535, 0.2
        %v1074 = vmul.f32 %v564, 0.2
        %v1075 = vmul.f32 %v593, 0.2
        %v1076 = vmul.f32 %v622, 0.2
        %v1077 = vmul.f32 %v651, 0.2
        %v1078 = vmul.f32 %v680, 0.2
        %v1079 = vmul.f32 %v709, 0.2
        %v1080 = vmul.f32 %v738, 0.2
        %v1081 = vmul.f32 %v767, 0.2
        %v1082 = vmul.f32 %v796, 0.2
        %v1083 = vmul.f32 %v825, 0.2
        %v1084 = vmul.f32 %v854, 0.2
        %v1085 = vmul.f32 %v422, 0.2
        %v1086 = vmul.f32 %v451, 0.2
        %v1087 = vmul.f32 %v480, 0.2
        %v1088 = vmul.f32 %v509, 0.2
        %v1089 = vmul.f32 %v538, 0.2
        %v1090 = vmul.f32 %v567, 0.2
        %v1091 = vmul.f32 %v596, 0.2
        %v1092 = vmul.f32 %v625, 0.2
        %v1093 = vmul.f32 %v654, 0.2
        %v1094 = vmul.f32 %v683, 0.2
        %v1095 = vmul.f32 %v712, 0.2
        %v1096 = vmul.f32 %v741, 0.2
        %v1097 = vmul.f32 %v770, 0.2
        %v1098 = vmul.f32 %v799, 0.2
        %v1099 = vmul.f32 %v828, 0.2
        %v1100 = vmul.f32 %v857, 0.2
        %v1101 = vmul.f32 %v424, 0.2
        %v1102 = vmul.f32 %v453, 0.2
        %v1103 = vmul.f32 %v482, 0.2
        %v1104 = vmul.f32 %v511, 0.2
        %v1105 = vmul.f32 %v540, 0.2
        %v1106 = vmul.f32 %v569, 0.2
        %v1107 = vmul.f32 %v598, 0.2
        %v1108 = vmul.f32 %v627, 0.2
        %v1109 = vmul.f32 %v656, 0.2
        %v1110 = vmul.f32 %v685, 0.2
        %v1111 = vmul.f32 %v714, 0.2
        %v1112 = vmul.f32 %v743, 0.2
        %v1113 = vmul.f32 %v772, 0.2
        %v1114 = vmul.f32 %v801, 0.2
        %v1115 = vmul.f32 %v830, 0.2
        %v1116 = vmul.f32 %v859, 0.2
        %v1117 = vsel %vm861, %v407, %v989
        %v1118 = vsel %vm862, %v436, %v990
        %v1119 = vsel %vm863, %v465, %v991
        %v1120 = vsel %vm864, %v494, %v992
        %v1121 = vsel %vm865, %v523, %v993
        %v1122 = vsel %vm866, %v552, %v994
        %v1123 = vsel %vm867, %v581, %v995
        %v1124 = vsel %vm868, %v610, %v996
        %v1125 = vsel %vm869, %v639, %v997
        %v1126 = vsel %vm870, %v668, %v998
        %v1127 = vsel %vm871, %v697, %v999
        %v1128 = vsel %vm872, %v726, %v1000
        %v1129 = vsel %vm873, %v755, %v1001
        %v1130 = vsel %vm874, %v784, %v1002
        %v1131 = vsel %vm875, %v813, %v1003
        %v1132 = vsel %vm876, %v842, %v1004
        %v1133 = vsel %vm877, %v409, %v1005
        %v1134 = vsel %vm878, %v438, %v1006
        %v1135 = vsel %vm879, %v467, %v1007
        %v1136 = vsel %vm880, %v496, %v1008
        %v1137 = vsel %vm881, %v525, %v1009
        %v1138 = vsel %vm882, %v554, %v1010
        %v1139 = vsel %vm883, %v583, %v1011
        %v1140 = vsel %vm884, %v612, %v1012
        %v1141 = vsel %vm885, %v641, %v1013
        %v1142 = vsel %vm886, %v670, %v1014
        %v1143 = vsel %vm887, %v699, %v1015
        %v1144 = vsel %vm888, %v728, %v1016
        %v1145 = vsel %vm889, %v757, %v1017
        %v1146 = vsel %vm890, %v786, %v1018
        %v1147 = vsel %vm891, %v815, %v1019
        %v1148 = vsel %vm892, %v844, %v1020
        %v1149 = vsel %vm893, %v412, %v1021
        %v1150 = vsel %vm894, %v441, %v1022
        %v1151 = vsel %vm895, %v470, %v1023
        %v1152 = vsel %vm896, %v499, %v1024
        %v1153 = vsel %vm897, %v528, %v1025
        %v1154 = vsel %vm898, %v557, %v1026
        %v1155 = vsel %vm899, %v586, %v1027
        %v1156 = vsel %vm900, %v615, %v1028
        %v1157 = vsel %vm901, %v644, %v1029
        %v1158 = vsel %vm902, %v673, %v1030
        %v1159 = vsel %vm903, %v702, %v1031
        %v1160 = vsel %vm904, %v731, %v1032
        %v1161 = vsel %vm905, %v760, %v1033
        %v1162 = vsel %vm906, %v789, %v1034
        %v1163 = vsel %vm907, %v818, %v1035
        %v1164 = vsel %vm908, %v847, %v1036
        %v1165 = vsel %vm909, %v414, %v1037
        %v1166 = vsel %vm910, %v443, %v1038
        %v1167 = vsel %vm911, %v472, %v1039
        %v1168 = vsel %vm912, %v501, %v1040
        %v1169 = vsel %vm913, %v530, %v1041
        %v1170 = vsel %vm914, %v559, %v1042
        %v1171 = vsel %vm915, %v588, %v1043
        %v1172 = vsel %vm916, %v617, %v1044
        %v1173 = vsel %vm917, %v646, %v1045
        %v1174 = vsel %vm918, %v675, %v1046
        %v1175 = vsel %vm919, %v704, %v1047
        %v1176 = vsel %vm920, %v733, %v1048
        %v1177 = vsel %vm921, %v762, %v1049
        %v1178 = vsel %vm922, %v791, %v1050
        %v1179 = vsel %vm923, %v820, %v1051
        %v1180 = vsel %vm924, %v849, %v1052
        %v1181 = vsel %vm925, %v417, %v1053
        %v1182 = vsel %vm926, %v446, %v1054
        %v1183 = vsel %vm927, %v475, %v1055
        %v1184 = vsel %vm928, %v504, %v1056
        %v1185 = vsel %vm929, %v533, %v1057
        %v1186 = vsel %vm930, %v562, %v1058
        %v1187 = vsel %vm931, %v591, %v1059
        %v1188 = vsel %vm932, %v620, %v1060
        %v1189 = vsel %vm933, %v649, %v1061
        %v1190 = vsel %vm934, %v678, %v1062
        %v1191 = vsel %vm935, %v707, %v1063
        %v1192 = vsel %vm936, %v736, %v1064
        %v1193 = vsel %vm937, %v765, %v1065
        %v1194 = vsel %vm938, %v794, %v1066
        %v1195 = vsel %vm939, %v823, %v1067
        %v1196 = vsel %vm940, %v852, %v1068
        %v1197 = vsel %vm941, %v419, %v1069
        %v1198 = vsel %vm942, %v448, %v1070
        %v1199 = vsel %vm943, %v477, %v1071
        %v1200 = vsel %vm944, %v506, %v1072
        %v1201 = vsel %vm945, %v535, %v1073
        %v1202 = vsel %vm946, %v564, %v1074
        %v1203 = vsel %vm947, %v593, %v1075
        %v1204 = vsel %vm948, %v622, %v1076
        %v1205 = vsel %vm949, %v651, %v1077
        %v1206 = vsel %vm950, %v680, %v1078
        %v1207 = vsel %vm951, %v709, %v1079
        %v1208 = vsel %vm952, %v738, %v1080
        %v1209 = vsel %vm953, %v767, %v1081
        %v1210 = vsel %vm954, %v796, %v1082
        %v1211 = vsel %vm955, %v825, %v1083
        %v1212 = vsel %vm956, %v854, %v1084
        %v1213 = vsel %vm957, %v422, %v1085
        %v1214 = vsel %vm958, %v451, %v1086
        %v1215 = vsel %vm959, %v480, %v1087
        %v1216 = vsel %vm960, %v509, %v1088
        %v1217 = vsel %vm961, %v538, %v1089
        %v1218 = vsel %vm962, %v567, %v1090
        %v1219 = vsel %vm963, %v596, %v1091
        %v1220 = vsel %vm964, %v625, %v1092
        %v1221 = vsel %vm965, %v654, %v1093
        %v1222 = vsel %vm966, %v683, %v1094
        %v1223 = vsel %vm967, %v712, %v1095
        %v1224 = vsel %vm968, %v741, %v1096
        %v1225 = vsel %vm969, %v770, %v1097
        %v1226 = vsel %vm970, %v799, %v1098
        %v1227 = vsel %vm971, %v828, %v1099
        %v1228 = vsel %vm972, %v857, %v1100
        %v1229 = vsel %vm973, %v424, %v1101
        %v1230 = vsel %vm974, %v453, %v1102
        %v1231 = vsel %vm975, %v482, %v1103
        %v1232 = vsel %vm976, %v511, %v1104
        %v1233 = vsel %vm977, %v540, %v1105
        %v1234 = vsel %vm978, %v569, %v1106
        %v1235 = vsel %vm979, %v598, %v1107
        %v1236 = vsel %vm980, %v627, %v1108
        %v1237 = vsel %vm981, %v656, %v1109
        %v1238 = vsel %vm982, %v685, %v1110
        %v1239 = vsel %vm983, %v714, %v1111
        %v1240 = vsel %vm984, %v743, %v1112
        %v1241 = vsel %vm985, %v772, %v1113
        %v1242 = vsel %vm986, %v801, %v1114
        %v1243 = vsel %vm987, %v830, %v1115
        %v1244 = vsel %vm988, %v859, %v1116
        %1245 = vst [vmem:[%s208] sm:$0xff] %v1117
        %1246 = vst [vmem:[%s208 + $0x8] sm:$0xff] %v1118
        %1247 = vst [vmem:[%s208 + $0x10] sm:$0xff] %v1119
        %1248 = vst [vmem:[%s208 + $0x18] sm:$0xff] %v1120
        %1249 = vst [vmem:[%s208 + $0x20] sm:$0xff] %v1121
        %1250 = vst [vmem:[%s208 + $0x28] sm:$0xff] %v1122
        %1251 = vst [vmem:[%s208 + $0x30] sm:$0xff] %v1123
        %1252 = vst [vmem:[%s208 + $0x38] sm:$0xff] %v1124
        %1253 = vst [vmem:[%s208 + $0x40] sm:$0xff] %v1125
        %1254 = vst [vmem:[%s208 + $0x48] sm:$0xff] %v1126
        %1255 = vst [vmem:[%s208 + $0x50] sm:$0xff] %v1127
        %1256 = vst [vmem:[%s208 + $0x58] sm:$0xff] %v1128
        %1257 = vst [vmem:[%s208 + $0x60] sm:$0xff] %v1129
        %1258 = vst [vmem:[%s208 + $0x68] sm:$0xff] %v1130
        %1259 = vst [vmem:[%s208 + $0x70] sm:$0xff] %v1131
        %1260 = vst [vmem:[%s208 + $0x78] sm:$0xff] %v1132
        %1261 = vst [vmem:[%s208 + $0x80] sm:$0xff] %v1133
        %1262 = vst [vmem:[%s208 + $0x88] sm:$0xff] %v1134
        %1263 = vst [vmem:[%s208 + $0x90] sm:$0xff] %v1135
        %1264 = vst [vmem:[%s208 + $0x98] sm:$0xff] %v1136
        %1265 = vst [vmem:[%s208 + $0xa0] sm:$0xff] %v1137
        %1266 = vst [vmem:[%s208 + $0xa8] sm:$0xff] %v1138
        %1267 = vst [vmem:[%s208 + $0xb0] sm:$0xff] %v1139
        %1268 = vst [vmem:[%s208 + $0xb8] sm:$0xff] %v1140
        %1269 = vst [vmem:[%s208 + $0xc0] sm:$0xff] %v1141
        %1270 = vst [vmem:[%s208 + $0xc8] sm:$0xff] %v1142
        %1271 = vst [vmem:[%s208 + $0xd0] sm:$0xff] %v1143
        %1272 = vst [vmem:[%s208 + $0xd8] sm:$0xff] %v1144
        %1273 = vst [vmem:[%s208 + $0xe0] sm:$0xff] %v1145
        %1274 = vst [vmem:[%s208 + $0xe8] sm:$0xff] %v1146
        %1275 = vst [vmem:[%s208 + $0xf0] sm:$0xff] %v1147
        %1276 = vst [vmem:[%s208 + $0xf8] sm:$0xff] %v1148
        %1277 = vst [vmem:[%s208 + $0x100] sm:$0xff] %v1149
        %1278 = vst [vmem:[%s208 + $0x108] sm:$0xff] %v1150
        %1279 = vst [vmem:[%s208 + $0x110] sm:$0xff] %v1151
        %1280 = vst [vmem:[%s208 + $0x118] sm:$0xff] %v1152
        %1281 = vst [vmem:[%s208 + $0x120] sm:$0xff] %v1153
        %1282 = vst [vmem:[%s208 + $0x128] sm:$0xff] %v1154
        %1283 = vst [vmem:[%s208 + $0x130] sm:$0xff] %v1155
        %1284 = vst [vmem:[%s208 + $0x138] sm:$0xff] %v1156
        %1285 = vst [vmem:[%s208 + $0x140] sm:$0xff] %v1157
        %1286 = vst [vmem:[%s208 + $0x148] sm:$0xff] %v1158
        %1287 = vst [vmem:[%s208 + $0x150] sm:$0xff] %v1159
        %1288 = vst [vmem:[%s208 + $0x158] sm:$0xff] %v1160
        %1289 = vst [vmem:[%s208 + $0x160] sm:$0xff] %v1161
        %1290 = vst [vmem:[%s208 + $0x168] sm:$0xff] %v1162
        %1291 = vst [vmem:[%s208 + $0x170] sm:$0xff] %v1163
        %1292 = vst [vmem:[%s208 + $0x178] sm:$0xff] %v1164
        %1293 = vst [vmem:[%s208 + $0x180] sm:$0xff] %v1165
        %1294 = vst [vmem:[%s208 + $0x188] sm:$0xff] %v1166
        %1295 = vst [vmem:[%s208 + $0x190] sm:$0xff] %v1167
        %1296 = vst [vmem:[%s208 + $0x198] sm:$0xff] %v1168
        %1297 = vst [vmem:[%s208 + $0x1a0] sm:$0xff] %v1169
        %1298 = vst [vmem:[%s208 + $0x1a8] sm:$0xff] %v1170
        %1299 = vst [vmem:[%s208 + $0x1b0] sm:$0xff] %v1171
        %1300 = vst [vmem:[%s208 + $0x1b8] sm:$0xff] %v1172
        %1301 = vst [vmem:[%s208 + $0x1c0] sm:$0xff] %v1173
        %1302 = vst [vmem:[%s208 + $0x1c8] sm:$0xff] %v1174
        %1303 = vst [vmem:[%s208 + $0x1d0] sm:$0xff] %v1175
        %1304 = vst [vmem:[%s208 + $0x1d8] sm:$0xff] %v1176
        %1305 = vst [vmem:[%s208 + $0x1e0] sm:$0xff] %v1177
        %1306 = vst [vmem:[%s208 + $0x1e8] sm:$0xff] %v1178
        %1307 = vst [vmem:[%s208 + $0x1f0] sm:$0xff] %v1179
        %1308 = vst [vmem:[%s208 + $0x1f8] sm:$0xff] %v1180
        %1309 = vst [vmem:[%s208 + $0x200] sm:$0xff] %v1181
        %1310 = vst [vmem:[%s208 + $0x208] sm:$0xff] %v1182
        %1311 = vst [vmem:[%s208 + $0x210] sm:$0xff] %v1183
        %1312 = vst [vmem:[%s208 + $0x218] sm:$0xff] %v1184
        %1313 = vst [vmem:[%s208 + $0x220] sm:$0xff] %v1185
        %1314 = vst [vmem:[%s208 + $0x228] sm:$0xff] %v1186
        %1315 = vst [vmem:[%s208 + $0x230] sm:$0xff] %v1187
        %1316 = vst [vmem:[%s208 + $0x238] sm:$0xff] %v1188
        %1317 = vst [vmem:[%s208 + $0x240] sm:$0xff] %v1189
        %1318 = vst [vmem:[%s208 + $0x248] sm:$0xff] %v1190
        %1319 = vst [vmem:[%s208 + $0x250] sm:$0xff] %v1191
        %1320 = vst [vmem:[%s208 + $0x258] sm:$0xff] %v1192
        %1321 = vst [vmem:[%s208 + $0x260] sm:$0xff] %v1193
        %1322 = vst [vmem:[%s208 + $0x268] sm:$0xff] %v1194
        %1323 = vst [vmem:[%s208 + $0x270] sm:$0xff] %v1195
        %1324 = vst [vmem:[%s208 + $0x278] sm:$0xff] %v1196
        %1325 = vst [vmem:[%s208 + $0x280] sm:$0xff] %v1197
        %1326 = vst [vmem:[%s208 + $0x288] sm:$0xff] %v1198
        %1327 = vst [vmem:[%s208 + $0x290] sm:$0xff] %v1199
        %1328 = vst [vmem:[%s208 + $0x298] sm:$0xff] %v1200
        %1329 = vst [vmem:[%s208 + $0x2a0] sm:$0xff] %v1201
        %1330 = vst [vmem:[%s208 + $0x2a8] sm:$0xff] %v1202
        %1331 = vst [vmem:[%s208 + $0x2b0] sm:$0xff] %v1203
        %1332 = vst [vmem:[%s208 + $0x2b8] sm:$0xff] %v1204
        %1333 = vst [vmem:[%s208 + $0x2c0] sm:$0xff] %v1205
        %1334 = vst [vmem:[%s208 + $0x2c8] sm:$0xff] %v1206
        %1335 = vst [vmem:[%s208 + $0x2d0] sm:$0xff] %v1207
        %1336 = vst [vmem:[%s208 + $0x2d8] sm:$0xff] %v1208
        %1337 = vst [vmem:[%s208 + $0x2e0] sm:$0xff] %v1209
        %1338 = vst [vmem:[%s208 + $0x2e8] sm:$0xff] %v1210
        %1339 = vst [vmem:[%s208 + $0x2f0] sm:$0xff] %v1211
        %1340 = vst [vmem:[%s208 + $0x2f8] sm:$0xff] %v1212
        %1341 = vst [vmem:[%s208 + $0x300] sm:$0xff] %v1213
        %1342 = vst [vmem:[%s208 + $0x308] sm:$0xff] %v1214
        %1343 = vst [vmem:[%s208 + $0x310] sm:$0xff] %v1215
        %1344 = vst [vmem:[%s208 + $0x318] sm:$0xff] %v1216
        %1345 = vst [vmem:[%s208 + $0x320] sm:$0xff] %v1217
        %1346 = vst [vmem:[%s208 + $0x328] sm:$0xff] %v1218
        %1347 = vst [vmem:[%s208 + $0x330] sm:$0xff] %v1219
        %1348 = vst [vmem:[%s208 + $0x338] sm:$0xff] %v1220
        %1349 = vst [vmem:[%s208 + $0x340] sm:$0xff] %v1221
        %1350 = vst [vmem:[%s208 + $0x348] sm:$0xff] %v1222
        %1351 = vst [vmem:[%s208 + $0x350] sm:$0xff] %v1223
        %1352 = vst [vmem:[%s208 + $0x358] sm:$0xff] %v1224
        %1353 = vst [vmem:[%s208 + $0x360] sm:$0xff] %v1225
        %1354 = vst [vmem:[%s208 + $0x368] sm:$0xff] %v1226
        %1355 = vst [vmem:[%s208 + $0x370] sm:$0xff] %v1227
        %1356 = vst [vmem:[%s208 + $0x378] sm:$0xff] %v1228
        %1357 = vst [vmem:[%s208 + $0x380] sm:$0xff] %v1229
        %1358 = vst [vmem:[%s208 + $0x388] sm:$0xff] %v1230
        %1359 = vst [vmem:[%s208 + $0x390] sm:$0xff] %v1231
        %1360 = vst [vmem:[%s208 + $0x398] sm:$0xff] %v1232
        %1361 = vst [vmem:[%s208 + $0x3a0] sm:$0xff] %v1233
        %1362 = vst [vmem:[%s208 + $0x3a8] sm:$0xff] %v1234
        %1363 = vst [vmem:[%s208 + $0x3b0] sm:$0xff] %v1235
        %1364 = vst [vmem:[%s208 + $0x3b8] sm:$0xff] %v1236
        %1365 = vst [vmem:[%s208 + $0x3c0] sm:$0xff] %v1237
        %1366 = vst [vmem:[%s208 + $0x3c8] sm:$0xff] %v1238
        %1367 = vst [vmem:[%s208 + $0x3d0] sm:$0xff] %v1239
        %1368 = vst [vmem:[%s208 + $0x3d8] sm:$0xff] %v1240
        %1369 = vst [vmem:[%s208 + $0x3e0] sm:$0xff] %v1241
        %1370 = vst [vmem:[%s208 + $0x3e8] sm:$0xff] %v1242
        %1371 = vst [vmem:[%s208 + $0x3f0] sm:$0xff] %v1243
        %1372 = vst [vmem:[%s208 + $0x3f8] sm:$0xff] %v1244
        %s1373 = sand.u32 %s112, 1
        %s1374 = scalar_lea.sflag [#allocation4], %s1373
        %s1375 = sand.u32 %s112, 1
        %s1376 = smul.addr %s1375, 1024
        %s1377 = scalar_lea.vmem [#allocation5], %s1376
        // Predicated region
        $region37: #{tpu_custom_call.1} parent=31 // pred_check
          %p1378 = pneg %p122
        $region38: #{tpu_custom_call.1} parent=31 // pred_check_branch
          %1380 = sbr.rel (%p1378) target = $region40
        $region39: #{tpu_custom_call.1} parent=31 // pred_region
          %s1381 = smul.u32 16, %s25
          %1383 = vsyncadd %s1374, 0
          %s1384 = smul.addr %s24, 128
          %s1385 = sadd.s32 %s1381, %s1384
          %s1386 = smul.addr %s1385, 8
          %s1387 = scalar_lea.hbm %s3, %s1386
          %s1388 = sshll.u32 %s1377, 4
          %s1389 = int_to_ptr.vmem [resolvable:$true] %s1388
          %s1390 = sshll.u32 %s1387, 4
          %s1391 = int_to_ptr.hbm [resolvable:$true] %s1390
          %1396 = dma.vmem_to_hbm [thread:$0]  %s1389, 16384, %s1391, %s1374, 2048, 2048, 128
        $region40: #{tpu_custom_call.1} parent=31 // pred_fallthru
          _
      $region32: #{tpu_custom_call.1} parent=5 // pred_fallthru
        _
      %p1397 = scmp.le.s32.totalorder 2, %s15
      // Predicated region
      $region41: #{tpu_custom_call.1} parent=5 // pred_check
        %p1398 = pneg %p1397
      $region42: #{tpu_custom_call.1} parent=5 // pred_check_branch
        %1400 = sbr.rel (%p1398) target = $region44
      $region43: #{tpu_custom_call.1} parent=5 // pred_region
        %s1401 = ssub.s32 %s15, 2
        // Predicated region
        $region45: #{tpu_custom_call.1} parent=43 // pred_check
          %p1402 = pneg %p128
        $region46: #{tpu_custom_call.1} parent=43 // pred_check_branch
          %1404 = sbr.rel (%p1402) target = $region48
        $region47: #{tpu_custom_call.1} parent=43 // pred_region
          %s1405 = sand.u32 %s113, 1
          %s1406 = scalar_lea.sflag [#allocation4], %s1405
          %s1407 = sand.u32 %s113, 1
          %s1408 = smul.addr %s1407, 1024
          %s1409 = scalar_lea.vmem [#allocation5], %s1408
          %1411 = dma.done %s1406, 16384
        $region48: #{tpu_custom_call.1} parent=43 // pred_fallthru
          _
      $region44: #{tpu_custom_call.1} parent=5 // pred_fallthru
        _
    $region6: #{tpu_custom_call.1} parent=1 // loop_footer
      %s19 = sadd.s32 1, %s15
    $region7: #{tpu_custom_call.1} parent=1 // loop_footer_branch
      %14 = sbr.rel target = $region3
    $region8: #{tpu_custom_call.1} parent=1 // loop_exit
      _
    %1412 = vsyncpa [#allocation3], 1
    %s1413 = scalar_lea.sflag [#allocation3], 1
    %1414 = vsyncpa %s1413, 1
    %1415 = vsyncpa [#allocation4], 1
    %s1416 = scalar_lea.sflag [#allocation4], 1
    %1417 = vsyncpa %s1416, 1

</llo_original>
